<compile_context>
chip_gen: v7x
topology: tpu7x:2x2x1
jax: 0.10.0
libtpu: 0.0.40
codegen_flags: <defaults>
</compile_context>

<pallas_src>
import jax
import jax.numpy as jnp
from jax import lax
from jax.experimental import pallas as pl
from jax.experimental.pallas import tpu as pltpu


_INV_SQRT2 = 0.7071067811865476


def _gated_ffn_kernel(x_ref, w1h_ref, w1g_ref, b1h_ref, b1g_ref, w2_ref, b2_ref, o_ref):
    # x_ref:   (tm, d_model)          activation tile (cast to bf16 for the MXU)
    # w1h_ref: (d_model, 2*d_model)   hidden half of W1^T, bf16, resident
    # w1g_ref: (d_model, 2*d_model)   gate   half of W1^T, bf16, resident
    # b1h/b1g: (1, 2*d_model)         f32
    # w2_ref:  (2*d_model, d_model)   W2^T, bf16, resident
    # b2_ref:  (1, d_model)           f32
    # o_ref:   (tm, d_model)
    x = x_ref[...].astype(jnp.bfloat16)

    hidden = jnp.dot(x, w1h_ref[...], preferred_element_type=jnp.float32) + b1h_ref[...]
    gate = jnp.dot(x, w1g_ref[...], preferred_element_type=jnp.float32) + b1g_ref[...]

    # Exact (erf-based) GELU in f32, matching torch.nn.GELU() default.
    gelu_gate = 0.5 * gate * (1.0 + lax.erf(gate * jnp.float32(_INV_SQRT2)))
    gated = (hidden * gelu_gate).astype(jnp.bfloat16)

    out = jnp.dot(gated, w2_ref[...], preferred_element_type=jnp.float32) + b2_ref[...]
    o_ref[...] = out.astype(o_ref.dtype)


def _vmem_limit_bytes(tm, d_model, single_buffer_weights):
    """Explicit scoped-VMEM budget: weights + biases + pipelined IO tiles + live f32."""
    wbuf = 1 if single_buffer_weights else 2
    w_bytes = 3 * (2 * d_model * d_model) * 2             # w1h + w1g + w2 (bf16)
    b_bytes = (2 * d_model + 2 * d_model + d_model) * 4   # biases (f32)
    io_bytes = 2 * 2 * tm * d_model * 4                   # x + o tiles, double-buffered, f32
    live_bytes = 4 * tm * (2 * d_model) * 4               # hidden/gate/gated f32 headroom
    total = wbuf * (w_bytes + b_bytes) + io_bytes + live_bytes + (4 << 20)
    return int(min(total, 96 << 20))


def _build_ffn_call(n_pad, d_model, tm, out_dtype, single_buffer_weights):
    d2 = 2 * d_model

    def const_spec(shape):
        # Constant index_map: block never changes across the grid, so a single
        # buffer suffices (halves resident-weight VMEM vs default double-buffering).
        if single_buffer_weights:
            return pl.BlockSpec(shape, lambda i: (0, 0), pipeline_mode=pl.Buffered(1))
        return pl.BlockSpec(shape, lambda i: (0, 0))

    return pl.pallas_call(
        _gated_ffn_kernel,
        out_shape=jax.ShapeDtypeStruct((n_pad, d_model), out_dtype),
        grid_spec=pltpu.PrefetchScalarGridSpec(
            num_scalar_prefetch=0,
            grid=(n_pad // tm,),
            in_specs=[
                pl.BlockSpec((tm, d_model), lambda i: (i, 0)),  # x tile (pipelined)
                const_spec((d_model, d2)),                      # W1^T hidden half
                const_spec((d_model, d2)),                      # W1^T gate half
                const_spec((1, d2)),                            # b1 hidden half
                const_spec((1, d2)),                            # b1 gate half
                const_spec((d2, d_model)),                      # W2^T
                const_spec((1, d_model)),                       # b2
            ],
            out_specs=pl.BlockSpec((tm, d_model), lambda i: (i, 0)),
        ),
        compiler_params=pltpu.CompilerParams(
            dimension_semantics=("parallel",),  # row tiles shard across TCs (v7x megacore)
            vmem_limit_bytes=_vmem_limit_bytes(tm, d_model, single_buffer_weights),
        ),
    )


def gated_ffn(x, w1h, w1g, b1h, b1g, w2, b2, *, tm=128):
    """x: (N, d_model) f32.  Weights bf16, pre-transposed and pre-split.

    tm: row tile.  128 saturates the v5e MXU; sweep 256-512 on v6e/v7x.
    Returns (N, d_model) in x.dtype.
    """
    n, d_model = x.shape
    d2 = 2 * d_model
    assert d_model % 128 == 0, "keep d_model lane-dense (multiple of 128)"
    assert tm % 8 == 0
    assert w1h.shape == (d_model, d2) and w1g.shape == (d_model, d2)
    assert w2.shape == (d2, d_model)

    # Ragged token counts: zero-pad rows up to a whole tile, slice off afterwards.
    n_pad = ((n + tm - 1) // tm) * tm
    x_p = x if n_pad == n else jnp.concatenate(
        [x, jnp.zeros((n_pad - n, d_model), x.dtype)], axis=0)

    args = (x_p, w1h, w1g,
            b1h.reshape(1, d2), b1g.reshape(1, d2),
            w2, b2.reshape(1, d_model))

    try:
        out = _build_ffn_call(n_pad, d_model, tm, x.dtype, True)(*args)
    except Exception:
        # Fallback for JAX builds where per-BlockSpec buffer counts are not honored
        # by the top-level pipeline; weights then use default double-buffering.
        out = _build_ffn_call(n_pad, d_model, tm, x.dtype, False)(*args)
    return out[:n]


def gated_ffn_ref(x, w1h, w1g, b1h, b1g, w2, b2):
    """Pure-JAX reference mirroring the kernel's bf16 casts (f32 accumulation)."""
    xb = x.astype(jnp.bfloat16).astype(jnp.float32)
    hidden = xb @ w1h.astype(jnp.float32) + b1h
    gate = xb @ w1g.astype(jnp.float32) + b1g
    g = 0.5 * gate * (1.0 + lax.erf(gate * jnp.float32(_INV_SQRT2)))
    gated = (hidden * g).astype(jnp.bfloat16).astype(jnp.float32)
    return gated @ w2.astype(jnp.float32) + b2


def init_params(key, d_model):
    """nn.Linear-style init, then split W1 exactly like torch's .chunk(2, dim=-1):
    first 2*d_model output columns -> hidden, last 2*d_model -> gate."""
    k1, k2, k3, k4 = jax.random.split(key, 4)
    lim1 = 1.0 / jnp.sqrt(d_model)
    lim2 = 1.0 / jnp.sqrt(2 * d_model)
    # Stored transposed: (in_features, out_features).
    w1t = jax.random.uniform(k1, (d_model, 4 * d_model), jnp.float32, -lim1, lim1)
    b1 = jax.random.uniform(k2, (4 * d_model,), jnp.float32, -lim1, lim1)
    w2t = jax.random.uniform(k3, (2 * d_model, d_model), jnp.float32, -lim2, lim2)
    b2 = jax.random.uniform(k4, (d_model,), jnp.float32, -lim2, lim2)

    d2 = 2 * d_model
    w1h = w1t[:, :d2].astype(jnp.bfloat16)   # hidden half of W1^T
    w1g = w1t[:, d2:].astype(jnp.bfloat16)   # gate half of W1^T
    b1h = b1[:d2]
    b1g = b1[d2:]
    w2 = w2t.astype(jnp.bfloat16)
    return w1h, w1g, b1h, b1g, w2, b2


if __name__ == "__main__":
    # Small demo shapes; d_model chosen lane-dense (multiple of 128).
    batch, seq, d_model = 2, 8, 128
    key = jax.random.PRNGKey(0)
    kx, kp = jax.random.split(key)

    x = jax.random.normal(kx, (batch, seq, d_model), jnp.float32)
    params = init_params(kp, d_model)

    # Flatten (B, T, D) -> (N, D) token rows for the kernel; reshape back after.
    x2d = x.reshape(batch * seq, d_model)
    out2d = gated_ffn(x2d, *params, tm=128)
    out = out2d.reshape(batch, seq, d_model)
    jax.block_until_ready(out)

    ref = gated_ffn_ref(x2d, *params).reshape(batch, seq, d_model)
    max_err = float(jnp.max(jnp.abs(out - ref)))
    assert jnp.allclose(out, ref, atol=2e-3, rtol=2e-3), f"mismatch vs reference (max abs err={max_err})"

    print("KERNEL_OK")
</pallas_src>

<mosaic_0001>
module attributes {stable_mosaic.version = 11 : i64} {
  func.func @_gated_ffn_kernel(%arg0: i32, %arg1: memref<128x128xf32, #tpu.memory_space<vmem>>, %arg2: memref<128x256xbf16, #tpu.memory_space<vmem>>, %arg3: memref<128x256xbf16, #tpu.memory_space<vmem>>, %arg4: memref<1x256xf32, #tpu.memory_space<vmem>>, %arg5: memref<1x256xf32, #tpu.memory_space<vmem>>, %arg6: memref<256x128xbf16, #tpu.memory_space<vmem>>, %arg7: memref<1x128xf32, #tpu.memory_space<vmem>>, %arg8: memref<128x128xf32, #tpu.memory_space<vmem>>) attributes {dimension_semantics = [#tpu.dimension_semantics<parallel>], iteration_bounds = array<i64: 1>, scalar_prefetch = 0 : i64, scratch_operands = 0 : i64, tpu.core_type = #tpu.core_type<tc>, window_params = [{transform_indices = @transform_0, window_bounds = array<i64: 128, 128>}, {pipeline_mode = #tpu.pipeline_mode<synchronous>, transform_indices = @transform_1, window_bounds = array<i64: 128, 256>}, {pipeline_mode = #tpu.pipeline_mode<synchronous>, transform_indices = @transform_2, window_bounds = array<i64: 128, 256>}, {pipeline_mode = #tpu.pipeline_mode<synchronous>, transform_indices = @transform_3, window_bounds = array<i64: 1, 256>}, {pipeline_mode = #tpu.pipeline_mode<synchronous>, transform_indices = @transform_4, window_bounds = array<i64: 1, 256>}, {pipeline_mode = #tpu.pipeline_mode<synchronous>, transform_indices = @transform_5, window_bounds = array<i64: 256, 128>}, {pipeline_mode = #tpu.pipeline_mode<synchronous>, transform_indices = @transform_6, window_bounds = array<i64: 1, 128>}, {transform_indices = @transform_7, window_bounds = array<i64: 128, 128>}]} {
    %c0 = arith.constant 0 : index
    %c0_0 = arith.constant 0 : index
    %0 = vector.load %arg1[%c0, %c0_0] : memref<128x128xf32, #tpu.memory_space<vmem>>, vector<128x128xf32>
    %1 = arith.truncf %0 : vector<128x128xf32> to vector<128x128xbf16>
    %c0_1 = arith.constant 0 : index
    %c0_2 = arith.constant 0 : index
    %2 = vector.load %arg2[%c0_1, %c0_2] : memref<128x256xbf16, #tpu.memory_space<vmem>>, vector<128x256xbf16>
    %cst = arith.constant dense<0.000000e+00> : vector<128x256xf32>
    %3 = tpu.matmul %1, %2, %cst {dimension_numbers = #tpu.dot_dimension_numbers<[1], [0], [0], [1], [0, 0, 1, 1], [], []>} : vector<128x128xbf16>, vector<128x256xbf16>, vector<128x256xf32> -> vector<128x256xf32>
    %c0_3 = arith.constant 0 : index
    %c0_4 = arith.constant 0 : index
    %4 = vector.load %arg4[%c0_3, %c0_4] : memref<1x256xf32, #tpu.memory_space<vmem>>, vector<1x256xf32>
    %5 = vector.broadcast %4 : vector<1x256xf32> to vector<128x256xf32>
    %6 = arith.addf %3, %5 : vector<128x256xf32>
    %c0_5 = arith.constant 0 : index
    %c0_6 = arith.constant 0 : index
    %7 = vector.load %arg3[%c0_5, %c0_6] : memref<128x256xbf16, #tpu.memory_space<vmem>>, vector<128x256xbf16>
    %cst_7 = arith.constant dense<0.000000e+00> : vector<128x256xf32>
    %8 = tpu.matmul %1, %7, %cst_7 {dimension_numbers = #tpu.dot_dimension_numbers<[1], [0], [0], [1], [0, 0, 1, 1], [], []>} : vector<128x128xbf16>, vector<128x256xbf16>, vector<128x256xf32> -> vector<128x256xf32>
    %c0_8 = arith.constant 0 : index
    %c0_9 = arith.constant 0 : index
    %9 = vector.load %arg5[%c0_8, %c0_9] : memref<1x256xf32, #tpu.memory_space<vmem>>, vector<1x256xf32>
    %10 = vector.broadcast %9 : vector<1x256xf32> to vector<128x256xf32>
    %11 = arith.addf %8, %10 : vector<128x256xf32>
    %cst_10 = arith.constant 5.000000e-01 : f32
    %12 = vector.broadcast %cst_10 : f32 to vector<128x256xf32>
    %13 = arith.mulf %12, %11 : vector<128x256xf32>
    %cst_11 = arith.constant 0.707106769 : f32
    %14 = vector.broadcast %cst_11 : f32 to vector<128x256xf32>
    %15 = arith.mulf %11, %14 : vector<128x256xf32>
    %16 = math.erf %15 : vector<128x256xf32>
    %cst_12 = arith.constant 1.000000e+00 : f32
    %17 = vector.broadcast %cst_12 : f32 to vector<128x256xf32>
    %18 = arith.addf %17, %16 : vector<128x256xf32>
    %19 = arith.mulf %13, %18 : vector<128x256xf32>
    %20 = arith.mulf %6, %19 : vector<128x256xf32>
    %21 = arith.truncf %20 : vector<128x256xf32> to vector<128x256xbf16>
    %c0_13 = arith.constant 0 : index
    %c0_14 = arith.constant 0 : index
    %22 = vector.load %arg6[%c0_13, %c0_14] : memref<256x128xbf16, #tpu.memory_space<vmem>>, vector<256x128xbf16>
    %cst_15 = arith.constant dense<0.000000e+00> : vector<128x128xf32>
    %23 = tpu.matmul %21, %22, %cst_15 {dimension_numbers = #tpu.dot_dimension_numbers<[1], [0], [0], [1], [0, 0, 1, 1], [], []>} : vector<128x256xbf16>, vector<256x128xbf16>, vector<128x128xf32> -> vector<128x128xf32>
    %c0_16 = arith.constant 0 : index
    %c0_17 = arith.constant 0 : index
    %24 = vector.load %arg7[%c0_16, %c0_17] : memref<1x128xf32, #tpu.memory_space<vmem>>, vector<1x128xf32>
    %25 = vector.broadcast %24 : vector<1x128xf32> to vector<128x128xf32>
    %26 = arith.addf %23, %25 : vector<128x128xf32>
    %c0_18 = arith.constant 0 : index
    %c0_19 = arith.constant 0 : index
    %27 = vector.load %arg8[%c0_18, %c0_19] : memref<128x128xf32, #tpu.memory_space<vmem>>, vector<128x128xf32>
    tpu.vector_store %arg8[%c0_18, %c0_19], %26 {strides = array<i32>} : memref<128x128xf32, #tpu.memory_space<vmem>>, vector<128x128xf32>,
    return
  }
  func.func @transform_0(%arg0: i32) -> (i32, i32) {
    %c0_i32 = arith.constant 0 : i32
    %c0_i32_0 = arith.constant 0 : i32
    return %arg0, %c0_i32 : i32, i32
  }
  func.func @transform_1(%arg0: i32) -> (i32, i32) {
    %c0_i32 = arith.constant 0 : i32
    %c0_i32_0 = arith.constant 0 : i32
    %c0_i32_1 = arith.constant 0 : i32
    return %c0_i32, %c0_i32_0 : i32, i32
  }
  func.func @transform_2(%arg0: i32) -> (i32, i32) {
    %c0_i32 = arith.constant 0 : i32
    %c0_i32_0 = arith.constant 0 : i32
    %c0_i32_1 = arith.constant 0 : i32
    return %c0_i32, %c0_i32_0 : i32, i32
  }
  func.func @transform_3(%arg0: i32) -> (i32, i32) {
    %c0_i32 = arith.constant 0 : i32
    %c0_i32_0 = arith.constant 0 : i32
    %c0_i32_1 = arith.constant 0 : i32
    return %c0_i32, %c0_i32_0 : i32, i32
  }
  func.func @transform_4(%arg0: i32) -> (i32, i32) {
    %c0_i32 = arith.constant 0 : i32
    %c0_i32_0 = arith.constant 0 : i32
    %c0_i32_1 = arith.constant 0 : i32
    return %c0_i32, %c0_i32_0 : i32, i32
  }
  func.func @transform_5(%arg0: i32) -> (i32, i32) {
    %c0_i32 = arith.constant 0 : i32
    %c0_i32_0 = arith.constant 0 : i32
    %c0_i32_1 = arith.constant 0 : i32
    return %c0_i32, %c0_i32_0 : i32, i32
  }
  func.func @transform_6(%arg0: i32) -> (i32, i32) {
    %c0_i32 = arith.constant 0 : i32
    %c0_i32_0 = arith.constant 0 : i32
    %c0_i32_1 = arith.constant 0 : i32
    return %c0_i32, %c0_i32_0 : i32, i32
  }
  func.func @transform_7(%arg0: i32) -> (i32, i32) {
    %c0_i32 = arith.constant 0 : i32
    %c0_i32_0 = arith.constant 0 : i32
    return %arg0, %c0_i32 : i32, i32
  }
}

module attributes {stable_mosaic.version = 11 : i64} {
  func.func @_gated_ffn_kernel(%arg0: i32, %arg1: memref<128x128xf32, #tpu.memory_space<vmem>>, %arg2: memref<128x256xbf16, #tpu.memory_space<vmem>>, %arg3: memref<128x256xbf16, #tpu.memory_space<vmem>>, %arg4: memref<1x256xf32, #tpu.memory_space<vmem>>, %arg5: memref<1x256xf32, #tpu.memory_space<vmem>>, %arg6: memref<256x128xbf16, #tpu.memory_space<vmem>>, %arg7: memref<1x128xf32, #tpu.memory_space<vmem>>, %arg8: memref<128x128xf32, #tpu.memory_space<vmem>>) attributes {dimension_semantics = [#tpu.dimension_semantics<parallel>], iteration_bounds = array<i64: 1>, scalar_prefetch = 0 : i64, scratch_operands = 0 : i64, tpu.core_type = #tpu.core_type<tc>, window_params = [{transform_indices = @transform_0, window_bounds = array<i64: 128, 128>}, {pipeline_mode = #tpu.pipeline_mode<synchronous>, transform_indices = @transform_1, window_bounds = array<i64: 128, 256>}, {pipeline_mode = #tpu.pipeline_mode<synchronous>, transform_indices = @transform_2, window_bounds = array<i64: 128, 256>}, {pipeline_mode = #tpu.pipeline_mode<synchronous>, transform_indices = @transform_3, window_bounds = array<i64: 1, 256>}, {pipeline_mode = #tpu.pipeline_mode<synchronous>, transform_indices = @transform_4, window_bounds = array<i64: 1, 256>}, {pipeline_mode = #tpu.pipeline_mode<synchronous>, transform_indices = @transform_5, window_bounds = array<i64: 256, 128>}, {pipeline_mode = #tpu.pipeline_mode<synchronous>, transform_indices = @transform_6, window_bounds = array<i64: 1, 128>}, {transform_indices = @transform_7, window_bounds = array<i64: 128, 128>}]} {
    %c0 = arith.constant 0 : index
    %c0_0 = arith.constant 0 : index
    %0 = vector.load %arg1[%c0, %c0_0] : memref<128x128xf32, #tpu.memory_space<vmem>>, vector<128x128xf32>
    %1 = arith.truncf %0 : vector<128x128xf32> to vector<128x128xbf16>
    %c0_1 = arith.constant 0 : index
    %c0_2 = arith.constant 0 : index
    %2 = vector.load %arg2[%c0_1, %c0_2] : memref<128x256xbf16, #tpu.memory_space<vmem>>, vector<128x256xbf16>
    %cst = arith.constant dense<0.000000e+00> : vector<128x256xf32>
    %3 = tpu.matmul %1, %2, %cst {dimension_numbers = #tpu.dot_dimension_numbers<[1], [0], [0], [1], [0, 0, 1, 1], [], []>} : vector<128x128xbf16>, vector<128x256xbf16>, vector<128x256xf32> -> vector<128x256xf32>
    %c0_3 = arith.constant 0 : index
    %c0_4 = arith.constant 0 : index
    %4 = vector.load %arg4[%c0_3, %c0_4] : memref<1x256xf32, #tpu.memory_space<vmem>>, vector<1x256xf32>
    %5 = vector.broadcast %4 : vector<1x256xf32> to vector<128x256xf32>
    %6 = arith.addf %3, %5 : vector<128x256xf32>
    %c0_5 = arith.constant 0 : index
    %c0_6 = arith.constant 0 : index
    %7 = vector.load %arg3[%c0_5, %c0_6] : memref<128x256xbf16, #tpu.memory_space<vmem>>, vector<128x256xbf16>
    %cst_7 = arith.constant dense<0.000000e+00> : vector<128x256xf32>
    %8 = tpu.matmul %1, %7, %cst_7 {dimension_numbers = #tpu.dot_dimension_numbers<[1], [0], [0], [1], [0, 0, 1, 1], [], []>} : vector<128x128xbf16>, vector<128x256xbf16>, vector<128x256xf32> -> vector<128x256xf32>
    %c0_8 = arith.constant 0 : index
    %c0_9 = arith.constant 0 : index
    %9 = vector.load %arg5[%c0_8, %c0_9] : memref<1x256xf32, #tpu.memory_space<vmem>>, vector<1x256xf32>
    %10 = vector.broadcast %9 : vector<1x256xf32> to vector<128x256xf32>
    %11 = arith.addf %8, %10 : vector<128x256xf32>
    %cst_10 = arith.constant 5.000000e-01 : f32
    %12 = vector.broadcast %cst_10 : f32 to vector<128x256xf32>
    %13 = arith.mulf %12, %11 : vector<128x256xf32>
    %cst_11 = arith.constant 0.707106769 : f32
    %14 = vector.broadcast %cst_11 : f32 to vector<128x256xf32>
    %15 = arith.mulf %11, %14 : vector<128x256xf32>
    %16 = math.erf %15 : vector<128x256xf32>
    %cst_12 = arith.constant 1.000000e+00 : f32
    %17 = vector.broadcast %cst_12 : f32 to vector<128x256xf32>
    %18 = arith.addf %17, %16 : vector<128x256xf32>
    %19 = arith.mulf %13, %18 : vector<128x256xf32>
    %20 = arith.mulf %6, %19 : vector<128x256xf32>
    %21 = arith.truncf %20 : vector<128x256xf32> to vector<128x256xbf16>
    %c0_13 = arith.constant 0 : index
    %c0_14 = arith.constant 0 : index
    %22 = vector.load %arg6[%c0_13, %c0_14] : memref<256x128xbf16, #tpu.memory_space<vmem>>, vector<256x128xbf16>
    %cst_15 = arith.constant dense<0.000000e+00> : vector<128x128xf32>
    %23 = tpu.matmul %21, %22, %cst_15 {dimension_numbers = #tpu.dot_dimension_numbers<[1], [0], [0], [1], [0, 0, 1, 1], [], []>} : vector<128x256xbf16>, vector<256x128xbf16>, vector<128x128xf32> -> vector<128x128xf32>
    %c0_16 = arith.constant 0 : index
    %c0_17 = arith.constant 0 : index
    %24 = vector.load %arg7[%c0_16, %c0_17] : memref<1x128xf32, #tpu.memory_space<vmem>>, vector<1x128xf32>
    %25 = vector.broadcast %24 : vector<1x128xf32> to vector<128x128xf32>
    %26 = arith.addf %23, %25 : vector<128x128xf32>
    %c0_18 = arith.constant 0 : index
    %c0_19 = arith.constant 0 : index
    %27 = vector.load %arg8[%c0_18, %c0_19] : memref<128x128xf32, #tpu.memory_space<vmem>>, vector<128x128xf32>
    tpu.vector_store %arg8[%c0_18, %c0_19], %26 {strides = array<i32>} : memref<128x128xf32, #tpu.memory_space<vmem>>, vector<128x128xf32>,
    return
  }
  func.func @transform_0(%arg0: i32) -> (i32, i32) {
    %c0_i32 = arith.constant 0 : i32
    %c0_i32_0 = arith.constant 0 : i32
    return %arg0, %c0_i32 : i32, i32
  }
  func.func @transform_1(%arg0: i32) -> (i32, i32) {
    %c0_i32 = arith.constant 0 : i32
    %c0_i32_0 = arith.constant 0 : i32
    %c0_i32_1 = arith.constant 0 : i32
    return %c0_i32, %c0_i32_0 : i32, i32
  }
  func.func @transform_2(%arg0: i32) -> (i32, i32) {
    %c0_i32 = arith.constant 0 : i32
    %c0_i32_0 = arith.constant 0 : i32
    %c0_i32_1 = arith.constant 0 : i32
    return %c0_i32, %c0_i32_0 : i32, i32
  }
  func.func @transform_3(%arg0: i32) -> (i32, i32) {
    %c0_i32 = arith.constant 0 : i32
    %c0_i32_0 = arith.constant 0 : i32
    %c0_i32_1 = arith.constant 0 : i32
    return %c0_i32, %c0_i32_0 : i32, i32
  }
  func.func @transform_4(%arg0: i32) -> (i32, i32) {
    %c0_i32 = arith.constant 0 : i32
    %c0_i32_0 = arith.constant 0 : i32
    %c0_i32_1 = arith.constant 0 : i32
    return %c0_i32, %c0_i32_0 : i32, i32
  }
  func.func @transform_5(%arg0: i32) -> (i32, i32) {
    %c0_i32 = arith.constant 0 : i32
    %c0_i32_0 = arith.constant 0 : i32
    %c0_i32_1 = arith.constant 0 : i32
    return %c0_i32, %c0_i32_0 : i32, i32
  }
  func.func @transform_6(%arg0: i32) -> (i32, i32) {
    %c0_i32 = arith.constant 0 : i32
    %c0_i32_0 = arith.constant 0 : i32
    %c0_i32_1 = arith.constant 0 : i32
    return %c0_i32, %c0_i32_0 : i32, i32
  }
  func.func @transform_7(%arg0: i32) -> (i32, i32) {
    %c0_i32 = arith.constant 0 : i32
    %c0_i32_0 = arith.constant 0 : i32
    return %arg0, %c0_i32 : i32, i32
  }
}

</mosaic_0001>

<llo_original>
// kernel: tpu_custom_call.1
$region0: #{tpu_custom_call.1}
  #allocation0 [shape = 'u32[]', space=smem, size = 0x4, offset = 0x4, fixed_abs, tag = 'smem constant byte address 0x4 - core index']
  #allocation1 [shape = 'u32[144,128]{1,0:T(1,128)}', space=vmem, size = 0x12000, scoped, tag = 'internal scratch']
  %s0 = inlined_call_operand.hbm [shape: f32[128,128], index: 0, kind: input, shape index: {}]
  %s1 = inlined_call_operand.hbm [shape: bf16[128,256], index: 1, kind: input, shape index: {}]
  %s2 = inlined_call_operand.hbm [shape: bf16[128,256], index: 2, kind: input, shape index: {}]
  %s3 = inlined_call_operand.vmem [shape: f32[1,256], index: 3, kind: input, shape index: {}]
  %s4 = inlined_call_operand.vmem [shape: f32[1,256], index: 4, kind: input, shape index: {}]
  %s5 = inlined_call_operand.hbm [shape: bf16[256,128], index: 5, kind: input, shape index: {}]
  %s6 = inlined_call_operand.vmem [shape: f32[1,128], index: 6, kind: input, shape index: {}]
  %s7 = inlined_call_operand.hbm [shape: f32[128,128], index: 7, kind: output, shape index: {}]
  %s8 = sld [smem:[#allocation0]]
  $region54: #{tpu_custom_call.1} parent=0
    _
  %s10 = ssub.s32 1, %s8
  %s11 = scalar_select 0, %s10, %s8
  $region1: #{tpu_custom_call.1} parent=0
    #allocation2 [shape = 'u8[65536]{0}', space=vmem, size = 0x10000, scoped, tag = 'input window, operand 0, single buffered']
    #allocation3 [shape = 's32[1]{0}', space=sflag, size = 0x4, scoped, tag = 'scoped memory for tpu_custom_call.1']
    #allocation4 [shape = 's32[1]{0}', space=sflag, size = 0x4, scoped, tag = 'scoped memory for tpu_custom_call.1']
    #allocation5 [shape = 'u8[65536]{0}', space=vmem, size = 0x10000, scoped, tag = 'input window, operand 1, single buffered']
    #allocation6 [shape = 's32[1]{0}', space=sflag, size = 0x4, scoped, tag = 'scoped memory for tpu_custom_call.1']
    #allocation7 [shape = 'u8[65536]{0}', space=vmem, size = 0x10000, scoped, tag = 'input window, operand 2, single buffered']
    #allocation8 [shape = 'u8[65536]{0}', space=vmem, size = 0x10000, scoped, tag = 'input window, operand 5, single buffered']
    #allocation9 [shape = 's32[1]{0}', space=sflag, size = 0x4, scoped, tag = 'scoped memory for tpu_custom_call.1']
    #allocation10 [shape = 'u8[65536]{0}', space=vmem, size = 0x10000, scoped, tag = 'output window, operand 0, single buffered']
    %12 = vsyncpa [#allocation3], 0
    %13 = vsyncpa [#allocation6], 0
    %14 = vsyncpa [#allocation9], 0
    %15 = vsyncpa [#allocation4], 0
    // Predicated region
    $region2: #{tpu_custom_call.1} parent=1 // pred_check
      _
    $region3: #{tpu_custom_call.1} parent=1 // pred_check_branch
      %17 = sbr.rel (0) target = $region5
    $region4: #{tpu_custom_call.1} parent=1 // pred_region
      %s19 = ssub.s32 2048, 2048
      %20 = vsyncadd [#allocation3], %s19
      %s21 = sshll.u32 [#allocation2], 4
      %s22 = int_to_ptr.vmem [resolvable:$true] %s21
      %27 = dma.hbm_to_vmem [thread:$0]  %s0, 2048, %s22, [#allocation3], 128, 128, 8
    $region5: #{tpu_custom_call.1} parent=1 // pred_fallthru
      _
    // Predicated region
    $region6: #{tpu_custom_call.1} parent=1 // pred_check
      _
    $region7: #{tpu_custom_call.1} parent=1 // pred_check_branch
      %29 = sbr.rel (0) target = $region9
    $region8: #{tpu_custom_call.1} parent=1 // pred_region
      %s31 = ssub.s32 2048, 2048
      %32 = vsyncadd [#allocation6], %s31
      %s33 = sshll.u32 [#allocation5], 4
      %s34 = int_to_ptr.vmem [resolvable:$true] %s33
      %39 = dma.hbm_to_vmem [thread:$0]  %s1, 2048, %s34, [#allocation6], 128, 128, 8
    $region9: #{tpu_custom_call.1} parent=1 // pred_fallthru
      _
    // Predicated region
    $region10: #{tpu_custom_call.1} parent=1 // pred_check
      _
    $region11: #{tpu_custom_call.1} parent=1 // pred_check_branch
      %41 = sbr.rel (0) target = $region13
    $region12: #{tpu_custom_call.1} parent=1 // pred_region
      %s43 = ssub.s32 2048, 2048
      %44 = vsyncadd [#allocation6], %s43
      %s45 = sshll.u32 [#allocation7], 4
      %s46 = int_to_ptr.vmem [resolvable:$true] %s45
      %51 = dma.hbm_to_vmem [thread:$0]  %s2, 2048, %s46, [#allocation6], 128, 128, 8
    $region13: #{tpu_custom_call.1} parent=1 // pred_fallthru
      _
    // Predicated region
    $region14: #{tpu_custom_call.1} parent=1 // pred_check
      _
    $region15: #{tpu_custom_call.1} parent=1 // pred_check_branch
      %53 = sbr.rel (0) target = $region17
    $region16: #{tpu_custom_call.1} parent=1 // pred_region
      _
    $region17: #{tpu_custom_call.1} parent=1 // pred_fallthru
      _
    // Predicated region
    $region18: #{tpu_custom_call.1} parent=1 // pred_check
      _
    $region19: #{tpu_custom_call.1} parent=1 // pred_check_branch
      %55 = sbr.rel (0) target = $region21
    $region20: #{tpu_custom_call.1} parent=1 // pred_region
      _
    $region21: #{tpu_custom_call.1} parent=1 // pred_fallthru
      _
    // Predicated region
    $region22: #{tpu_custom_call.1} parent=1 // pred_check
      _
    $region23: #{tpu_custom_call.1} parent=1 // pred_check_branch
      %57 = sbr.rel (0) target = $region25
    $region24: #{tpu_custom_call.1} parent=1 // pred_region
      %s59 = ssub.s32 2048, 2048
      %60 = vsyncadd [#allocation9], %s59
      %s61 = sshll.u32 [#allocation8], 4
      %s62 = int_to_ptr.vmem [resolvable:$true] %s61
      %67 = dma.hbm_to_vmem [thread:$0]  %s5, 2048, %s62, [#allocation9], 64, 64, 4
    $region25: #{tpu_custom_call.1} parent=1 // pred_fallthru
      _
    // Predicated region
    $region26: #{tpu_custom_call.1} parent=1 // pred_check
      _
    $region27: #{tpu_custom_call.1} parent=1 // pred_check_branch
      %69 = sbr.rel (0) target = $region29
    $region28: #{tpu_custom_call.1} parent=1 // pred_region
      _
    $region29: #{tpu_custom_call.1} parent=1 // pred_fallthru
      _
    // Predicated region
    $region30: #{tpu_custom_call.1} parent=1 // pred_check
      _
    $region31: #{tpu_custom_call.1} parent=1 // pred_check_branch
      %71 = sbr.rel (0) target = $region33
    $region32: #{tpu_custom_call.1} parent=1 // pred_region
      %72 = dma.done [#allocation3], 2048
    $region33: #{tpu_custom_call.1} parent=1 // pred_fallthru
      _
    // Predicated region
    $region34: #{tpu_custom_call.1} parent=1 // pred_check
      _
    $region35: #{tpu_custom_call.1} parent=1 // pred_check_branch
      %74 = sbr.rel (0) target = $region37
    $region36: #{tpu_custom_call.1} parent=1 // pred_region
      %75 = dma.done [#allocation6], 2048
    $region37: #{tpu_custom_call.1} parent=1 // pred_fallthru
      _
    // Predicated region
    $region38: #{tpu_custom_call.1} parent=1 // pred_check
      _
    $region39: #{tpu_custom_call.1} parent=1 // pred_check_branch
      %77 = sbr.rel (0) target = $region41
    $region40: #{tpu_custom_call.1} parent=1 // pred_region
      %78 = dma.done [#allocation6], 2048
    $region41: #{tpu_custom_call.1} parent=1 // pred_fallthru
      _
    // Predicated region
    $region42: #{tpu_custom_call.1} parent=1 // pred_check
      _
    $region43: #{tpu_custom_call.1} parent=1 // pred_check_branch
      %80 = sbr.rel (0) target = $region45
    $region44: #{tpu_custom_call.1} parent=1 // pred_region
      %81 = dma.done [#allocation9], 2048
    $region45: #{tpu_custom_call.1} parent=1 // pred_fallthru
      _
    %v83 = vld [vmem:[#allocation2] sm:$0xff]
    %v84 = vld [vmem:[#allocation2 + $0x8] sm:$0xff]
    %v85 = vld [vmem:[#allocation2 + $0x10] sm:$0xff]
    %v86 = vld [vmem:[#allocation2 + $0x18] sm:$0xff]
    %v87 = vld [vmem:[#allocation2 + $0x20] sm:$0xff]
    %v88 = vld [vmem:[#allocation2 + $0x28] sm:$0xff]
    %v89 = vld [vmem:[#allocation2 + $0x30] sm:$0xff]
    %v90 = vld [vmem:[#allocation2 + $0x38] sm:$0xff]
    %v91 = vld [vmem:[#allocation2 + $0x40] sm:$0xff]
    %v92 = vld [vmem:[#allocation2 + $0x48] sm:$0xff]
    %v93 = vld [vmem:[#allocation2 + $0x50] sm:$0xff]
    %v94 = vld [vmem:[#allocation2 + $0x58] sm:$0xff]
    %v95 = vld [vmem:[#allocation2 + $0x60] sm:$0xff]
    %v96 = vld [vmem:[#allocation2 + $0x68] sm:$0xff]
    %v97 = vld [vmem:[#allocation2 + $0x70] sm:$0xff]
    %v98 = vld [vmem:[#allocation2 + $0x78] sm:$0xff]
    %v99 = vpack.c.bf16 %v84, %v83
    %v100 = vpack.c.bf16 %v86, %v85
    %v101 = vpack.c.bf16 %v88, %v87
    %v102 = vpack.c.bf16 %v90, %v89
    %v103 = vpack.c.bf16 %v92, %v91
    %v104 = vpack.c.bf16 %v94, %v93
    %v105 = vpack.c.bf16 %v96, %v95
    %v106 = vpack.c.bf16 %v98, %v97
    %v107 = vld [vmem:[#allocation5] sm:$0xff]
    %v108 = vld [vmem:[#allocation5 + $0x8] sm:$0xff]
    %v109 = vld [vmem:[#allocation5 + $0x10] sm:$0xff]
    %v110 = vld [vmem:[#allocation5 + $0x18] sm:$0xff]
    %v111 = vld [vmem:[#allocation5 + $0x20] sm:$0xff]
    %v112 = vld [vmem:[#allocation5 + $0x28] sm:$0xff]
    %v113 = vld [vmem:[#allocation5 + $0x30] sm:$0xff]
    %v114 = vld [vmem:[#allocation5 + $0x38] sm:$0xff]
    %v115 = vld [vmem:[#allocation5 + $0x40] sm:$0xff]
    %v116 = vld [vmem:[#allocation5 + $0x48] sm:$0xff]
    %v117 = vld [vmem:[#allocation5 + $0x50] sm:$0xff]
    %v118 = vld [vmem:[#allocation5 + $0x58] sm:$0xff]
    %v119 = vld [vmem:[#allocation5 + $0x60] sm:$0xff]
    %v120 = vld [vmem:[#allocation5 + $0x68] sm:$0xff]
    %v121 = vld [vmem:[#allocation5 + $0x70] sm:$0xff]
    %v122 = vld [vmem:[#allocation5 + $0x78] sm:$0xff]
    %v123 = vld [vmem:[%s3] sm:$0x3]
    %v125 = vlaneseq
    %v126 = vshrl.u32 %v125, 7
    %v127 = vsub.s32 0, %v126
    %v128 = vrot.slane %v123, %v127
    %v129 = vlaneseq
    %v130 = vshrl.u32 %v129, 7
    %v131 = vsub.s32 1, %v130
    %v132 = vrot.slane %v123, %v131
    %v151 = vunpack.c.l.b16 %v107
    %v152 = vunpack.c.h.b16 %v107
    %v153 = vunpack.c.l.b16 %v108
    %v154 = vunpack.c.h.b16 %v108
    %v155 = vunpack.c.l.b16 %v109
    %v156 = vunpack.c.h.b16 %v109
    %v157 = vunpack.c.l.b16 %v110
    %v158 = vunpack.c.h.b16 %v110
    %v159 = vunpack.c.l.b16 %v111
    %v160 = vunpack.c.h.b16 %v111
    %v161 = vunpack.c.l.b16 %v112
    %v162 = vunpack.c.h.b16 %v112
    %v163 = vunpack.c.l.b16 %v113
    %v164 = vunpack.c.h.b16 %v113
    %v165 = vunpack.c.l.b16 %v114
    %v166 = vunpack.c.h.b16 %v114
    %v167 = vunpack.c.l.b16 %v115
    %v168 = vunpack.c.h.b16 %v115
    %v169 = vunpack.c.l.b16 %v116
    %v170 = vunpack.c.h.b16 %v116
    %v171 = vunpack.c.l.b16 %v117
    %v172 = vunpack.c.h.b16 %v117
    %v173 = vunpack.c.l.b16 %v118
    %v174 = vunpack.c.h.b16 %v118
    %v175 = vunpack.c.l.b16 %v119
    %v176 = vunpack.c.h.b16 %v119
    %v177 = vunpack.c.l.b16 %v120
    %v178 = vunpack.c.h.b16 %v120
    %v179 = vunpack.c.l.b16 %v121
    %v180 = vunpack.c.h.b16 %v121
    %v181 = vunpack.c.l.b16 %v122
    %v182 = vunpack.c.h.b16 %v122
    %v183 = vpack.c.b16 %v153, %v151
    %v184 = vpack.c.b16 %v154, %v152
    %v185 = vpack.c.b16 %v157, %v155
    %v186 = vpack.c.b16 %v158, %v156
    %v187 = vpack.c.b16 %v161, %v159
    %v188 = vpack.c.b16 %v162, %v160
    %v189 = vpack.c.b16 %v165, %v163
    %v190 = vpack.c.b16 %v166, %v164
    %v191 = vpack.c.b16 %v169, %v167
    %v192 = vpack.c.b16 %v170, %v168
    %v193 = vpack.c.b16 %v173, %v171
    %v194 = vpack.c.b16 %v174, %v172
    %v195 = vpack.c.b16 %v177, %v175
    %v196 = vpack.c.b16 %v178, %v176
    %v197 = vpack.c.b16 %v181, %v179
    %v198 = vpack.c.b16 %v182, %v180
    %215 = vmatprep.subr.bf16.mxu0 %v184
    %216 = vmatpush1.bf16.msra.mxu0 %v183
    %217 = vmatprep.subr.bf16.mxu0 %v186
    %218 = vmatpush1.bf16.msra.mxu0 %v185
    %219 = vmatprep.subr.bf16.mxu0 %v188
    %220 = vmatpush1.bf16.msra.mxu0 %v187
    %221 = vmatprep.subr.bf16.mxu0 %v190
    %222 = vmatpush1.bf16.msra.mxu0 %v189
    %223 = vmatprep.subr.bf16.mxu0 %v192
    %224 = vmatpush1.bf16.msra.mxu0 %v191
    %225 = vmatprep.subr.bf16.mxu0 %v194
    %226 = vmatpush1.bf16.msra.mxu0 %v193
    %227 = vmatprep.subr.bf16.mxu0 %v196
    %228 = vmatpush1.bf16.msra.mxu0 %v195
    %229 = vmatprep.subr.bf16.mxu0 %v198
    %230 = vmatpush1.bf16.msra.mxu0 %v197
    %231 = vmatprep.subr.bf16.mxu0 0
    %232 = vmatpush1.bf16.msra.mxu0 0
    %233 = vmatprep.subr.bf16.mxu0 0
    %234 = vmatpush1.bf16.msra.mxu0 0
    %235 = vmatprep.subr.bf16.mxu0 0
    %236 = vmatpush1.bf16.msra.mxu0 0
    %237 = vmatprep.subr.bf16.mxu0 0
    %238 = vmatpush1.bf16.msra.mxu0 0
    %239 = vmatprep.subr.bf16.mxu0 0
    %240 = vmatpush1.bf16.msra.mxu0 0
    %241 = vmatprep.subr.bf16.mxu0 0
    %242 = vmatpush1.bf16.msra.mxu0 0
    %243 = vmatprep.subr.bf16.mxu0 0
    %244 = vmatpush1.bf16.msra.mxu0 0
    %245 = vmatprep.subr.bf16.mxu0 0
    %246 = vmatpush1.bf16.msra.mxu0 0
    %247 = vmatprep.mubr.bf16.mxu0 0
    %248 = vmatmul.mubr.bf16.gmra.mrb[0].mxu0 %v99
    %v249 = vpop.f32.mrb[0].mxu0
    %v250 = vadd.f32 %v128, %v249
    %v251 = vpop.f32.mrb[0].mxu0
    %v252 = vadd.f32 %v132, %v251
    %v253 = vpop.f32.mrb[0].mxu0
    %v254 = vadd.f32 %v128, %v253
    %v255 = vpop.f32.mrb[0].mxu0
    %v256 = vadd.f32 %v132, %v255
    %257 = vmatprep.mubr.bf16.mxu0 0
    %258 = vmatmul.mubr.bf16.gmra.mrb[0].mxu0 %v100
    %v259 = vpop.f32.mrb[0].mxu0
    %v260 = vadd.f32 %v128, %v259
    %v261 = vpop.f32.mrb[0].mxu0
    %v262 = vadd.f32 %v132, %v261
    %v263 = vpop.f32.mrb[0].mxu0
    %v264 = vadd.f32 %v128, %v263
    %v265 = vpop.f32.mrb[0].mxu0
    %v266 = vadd.f32 %v132, %v265
    %267 = vmatprep.mubr.bf16.mxu0 0
    %268 = vmatmul.mubr.bf16.gmra.mrb[0].mxu0 %v101
    %v269 = vpop.f32.mrb[0].mxu0
    %v270 = vadd.f32 %v128, %v269
    %v271 = vpop.f32.mrb[0].mxu0
    %v272 = vadd.f32 %v132, %v271
    %v273 = vpop.f32.mrb[0].mxu0
    %v274 = vadd.f32 %v128, %v273
    %v275 = vpop.f32.mrb[0].mxu0
    %v276 = vadd.f32 %v132, %v275
    %277 = vmatprep.mubr.bf16.mxu0 0
    %278 = vmatmul.mubr.bf16.gmra.mrb[0].mxu0 %v102
    %v279 = vpop.f32.mrb[0].mxu0
    %v280 = vadd.f32 %v128, %v279
    %v281 = vpop.f32.mrb[0].mxu0
    %v282 = vadd.f32 %v132, %v281
    %v283 = vpop.f32.mrb[0].mxu0
    %v284 = vadd.f32 %v128, %v283
    %v285 = vpop.f32.mrb[0].mxu0
    %v286 = vadd.f32 %v132, %v285
    %287 = vmatprep.mubr.bf16.mxu0 0
    %288 = vmatmul.mubr.bf16.gmra.mrb[0].mxu0 %v103
    %v289 = vpop.f32.mrb[0].mxu0
    %v290 = vadd.f32 %v128, %v289
    %v291 = vpop.f32.mrb[0].mxu0
    %v292 = vadd.f32 %v132, %v291
    %v293 = vpop.f32.mrb[0].mxu0
    %v294 = vadd.f32 %v128, %v293
    %v295 = vpop.f32.mrb[0].mxu0
    %v296 = vadd.f32 %v132, %v295
    %297 = vmatprep.mubr.bf16.mxu0 0
    %298 = vmatmul.mubr.bf16.gmra.mrb[0].mxu0 %v104
    %v299 = vpop.f32.mrb[0].mxu0
    %v300 = vadd.f32 %v128, %v299
    %v301 = vpop.f32.mrb[0].mxu0
    %v302 = vadd.f32 %v132, %v301
    %v303 = vpop.f32.mrb[0].mxu0
    %v304 = vadd.f32 %v128, %v303
    %v305 = vpop.f32.mrb[0].mxu0
    %v306 = vadd.f32 %v132, %v305
    %307 = vmatprep.mubr.bf16.mxu0 0
    %308 = vmatmul.mubr.bf16.gmra.mrb[0].mxu0 %v105
    %v309 = vpop.f32.mrb[0].mxu0
    %v310 = vadd.f32 %v128, %v309
    %v311 = vpop.f32.mrb[0].mxu0
    %v312 = vadd.f32 %v132, %v311
    %v313 = vpop.f32.mrb[0].mxu0
    %v314 = vadd.f32 %v128, %v313
    %v315 = vpop.f32.mrb[0].mxu0
    %v316 = vadd.f32 %v132, %v315
    %317 = vmatprep.mubr.bf16.mxu0 0
    %318 = vmatmul.mubr.bf16.gmra.mrb[0].mxu0 %v106
    %v319 = vpop.f32.mrb[0].mxu0
    %v320 = vadd.f32 %v128, %v319
    %v321 = vpop.f32.mrb[0].mxu0
    %v322 = vadd.f32 %v132, %v321
    %v323 = vpop.f32.mrb[0].mxu0
    %v324 = vadd.f32 %v128, %v323
    %v325 = vpop.f32.mrb[0].mxu0
    %v326 = vadd.f32 %v132, %v325
    %327 = vdwg.mxu0
    %v328 = vld [vmem:[#allocation7] sm:$0xff]
    %v329 = vld [vmem:[#allocation7 + $0x8] sm:$0xff]
    %v330 = vld [vmem:[#allocation7 + $0x10] sm:$0xff]
    %v331 = vld [vmem:[#allocation7 + $0x18] sm:$0xff]
    %v332 = vld [vmem:[#allocation7 + $0x20] sm:$0xff]
    %v333 = vld [vmem:[#allocation7 + $0x28] sm:$0xff]
    %v334 = vld [vmem:[#allocation7 + $0x30] sm:$0xff]
    %v335 = vld [vmem:[#allocation7 + $0x38] sm:$0xff]
    %v336 = vld [vmem:[#allocation7 + $0x40] sm:$0xff]
    %v337 = vld [vmem:[#allocation7 + $0x48] sm:$0xff]
    %v338 = vld [vmem:[#allocation7 + $0x50] sm:$0xff]
    %v339 = vld [vmem:[#allocation7 + $0x58] sm:$0xff]
    %v340 = vld [vmem:[#allocation7 + $0x60] sm:$0xff]
    %v341 = vld [vmem:[#allocation7 + $0x68] sm:$0xff]
    %v342 = vld [vmem:[#allocation7 + $0x70] sm:$0xff]
    %v343 = vld [vmem:[#allocation7 + $0x78] sm:$0xff]
    %v344 = vld [vmem:[%s4] sm:$0x3]
    %v346 = vlaneseq
    %v347 = vshrl.u32 %v346, 7
    %v348 = vsub.s32 0, %v347
    %v349 = vrot.slane %v344, %v348
    %v350 = vlaneseq
    %v351 = vshrl.u32 %v350, 7
    %v352 = vsub.s32 1, %v351
    %v353 = vrot.slane %v344, %v352
    %v372 = vunpack.c.l.b16 %v328
    %v373 = vunpack.c.h.b16 %v328
    %v374 = vunpack.c.l.b16 %v329
    %v375 = vunpack.c.h.b16 %v329
    %v376 = vunpack.c.l.b16 %v330
    %v377 = vunpack.c.h.b16 %v330
    %v378 = vunpack.c.l.b16 %v331
    %v379 = vunpack.c.h.b16 %v331
    %v380 = vunpack.c.l.b16 %v332
    %v381 = vunpack.c.h.b16 %v332
    %v382 = vunpack.c.l.b16 %v333
    %v383 = vunpack.c.h.b16 %v333
    %v384 = vunpack.c.l.b16 %v334
    %v385 = vunpack.c.h.b16 %v334
    %v386 = vunpack.c.l.b16 %v335
    %v387 = vunpack.c.h.b16 %v335
    %v388 = vunpack.c.l.b16 %v336
    %v389 = vunpack.c.h.b16 %v336
    %v390 = vunpack.c.l.b16 %v337
    %v391 = vunpack.c.h.b16 %v337
    %v392 = vunpack.c.l.b16 %v338
    %v393 = vunpack.c.h.b16 %v338
    %v394 = vunpack.c.l.b16 %v339
    %v395 = vunpack.c.h.b16 %v339
    %v396 = vunpack.c.l.b16 %v340
    %v397 = vunpack.c.h.b16 %v340
    %v398 = vunpack.c.l.b16 %v341
    %v399 = vunpack.c.h.b16 %v341
    %v400 = vunpack.c.l.b16 %v342
    %v401 = vunpack.c.h.b16 %v342
    %v402 = vunpack.c.l.b16 %v343
    %v403 = vunpack.c.h.b16 %v343
    %v404 = vpack.c.b16 %v374, %v372
    %v405 = vpack.c.b16 %v375, %v373
    %v406 = vpack.c.b16 %v378, %v376
    %v407 = vpack.c.b16 %v379, %v377
    %v408 = vpack.c.b16 %v382, %v380
    %v409 = vpack.c.b16 %v383, %v381
    %v410 = vpack.c.b16 %v386, %v384
    %v411 = vpack.c.b16 %v387, %v385
    %v412 = vpack.c.b16 %v390, %v388
    %v413 = vpack.c.b16 %v391, %v389
    %v414 = vpack.c.b16 %v394, %v392
    %v415 = vpack.c.b16 %v395, %v393
    %v416 = vpack.c.b16 %v398, %v396
    %v417 = vpack.c.b16 %v399, %v397
    %v418 = vpack.c.b16 %v402, %v400
    %v419 = vpack.c.b16 %v403, %v401
    %436 = vmatprep.subr.bf16.mxu0 %v405
    %437 = vmatpush1.bf16.msra.mxu0 %v404
    %438 = vmatprep.subr.bf16.mxu0 %v407
    %439 = vmatpush1.bf16.msra.mxu0 %v406
    %440 = vmatprep.subr.bf16.mxu0 %v409
    %441 = vmatpush1.bf16.msra.mxu0 %v408
    %442 = vmatprep.subr.bf16.mxu0 %v411
    %443 = vmatpush1.bf16.msra.mxu0 %v410
    %444 = vmatprep.subr.bf16.mxu0 %v413
    %445 = vmatpush1.bf16.msra.mxu0 %v412
    %446 = vmatprep.subr.bf16.mxu0 %v415
    %447 = vmatpush1.bf16.msra.mxu0 %v414
    %448 = vmatprep.subr.bf16.mxu0 %v417
    %449 = vmatpush1.bf16.msra.mxu0 %v416
    %450 = vmatprep.subr.bf16.mxu0 %v419
    %451 = vmatpush1.bf16.msra.mxu0 %v418
    %452 = vmatprep.subr.bf16.mxu0 0
    %453 = vmatpush1.bf16.msra.mxu0 0
    %454 = vmatprep.subr.bf16.mxu0 0
    %455 = vmatpush1.bf16.msra.mxu0 0
    %456 = vmatprep.subr.bf16.mxu0 0
    %457 = vmatpush1.bf16.msra.mxu0 0
    %458 = vmatprep.subr.bf16.mxu0 0
    %459 = vmatpush1.bf16.msra.mxu0 0
    %460 = vmatprep.subr.bf16.mxu0 0
    %461 = vmatpush1.bf16.msra.mxu0 0
    %462 = vmatprep.subr.bf16.mxu0 0
    %463 = vmatpush1.bf16.msra.mxu0 0
    %464 = vmatprep.subr.bf16.mxu0 0
    %465 = vmatpush1.bf16.msra.mxu0 0
    %466 = vmatprep.subr.bf16.mxu0 0
    %467 = vmatpush1.bf16.msra.mxu0 0
    %468 = vmatprep.mubr.bf16.mxu0 0
    %469 = vmatmul.mubr.bf16.gmra.mrb[0].mxu0 %v99
    %v470 = vpop.f32.mrb[0].mxu0
    %v471 = vadd.f32 %v349, %v470
    %v472 = vpop.f32.mrb[0].mxu0
    %v473 = vadd.f32 %v353, %v472
    %v474 = vpop.f32.mrb[0].mxu0
    %v475 = vadd.f32 %v349, %v474
    %v476 = vpop.f32.mrb[0].mxu0
    %v477 = vadd.f32 %v353, %v476
    %478 = vmatprep.mubr.bf16.mxu0 0
    %479 = vmatmul.mubr.bf16.gmra.mrb[0].mxu0 %v100
    %v480 = vpop.f32.mrb[0].mxu0
    %v481 = vadd.f32 %v349, %v480
    %v482 = vpop.f32.mrb[0].mxu0
    %v483 = vadd.f32 %v353, %v482
    %v484 = vpop.f32.mrb[0].mxu0
    %v485 = vadd.f32 %v349, %v484
    %v486 = vpop.f32.mrb[0].mxu0
    %v487 = vadd.f32 %v353, %v486
    %488 = vmatprep.mubr.bf16.mxu0 0
    %489 = vmatmul.mubr.bf16.gmra.mrb[0].mxu0 %v101
    %v490 = vpop.f32.mrb[0].mxu0
    %v491 = vadd.f32 %v349, %v490
    %v492 = vpop.f32.mrb[0].mxu0
    %v493 = vadd.f32 %v353, %v492
    %v494 = vpop.f32.mrb[0].mxu0
    %v495 = vadd.f32 %v349, %v494
    %v496 = vpop.f32.mrb[0].mxu0
    %v497 = vadd.f32 %v353, %v496
    %498 = vmatprep.mubr.bf16.mxu0 0
    %499 = vmatmul.mubr.bf16.gmra.mrb[0].mxu0 %v102
    %v500 = vpop.f32.mrb[0].mxu0
    %v501 = vadd.f32 %v349, %v500
    %v502 = vpop.f32.mrb[0].mxu0
    %v503 = vadd.f32 %v353, %v502
    %v504 = vpop.f32.mrb[0].mxu0
    %v505 = vadd.f32 %v349, %v504
    %v506 = vpop.f32.mrb[0].mxu0
    %v507 = vadd.f32 %v353, %v506
    %508 = vmatprep.mubr.bf16.mxu0 0
    %509 = vmatmul.mubr.bf16.gmra.mrb[0].mxu0 %v103
    %v510 = vpop.f32.mrb[0].mxu0
    %v511 = vadd.f32 %v349, %v510
    %v512 = vpop.f32.mrb[0].mxu0
    %v513 = vadd.f32 %v353, %v512
    %v514 = vpop.f32.mrb[0].mxu0
    %v515 = vadd.f32 %v349, %v514
    %v516 = vpop.f32.mrb[0].mxu0
    %v517 = vadd.f32 %v353, %v516
    %518 = vmatprep.mubr.bf16.mxu0 0
    %519 = vmatmul.mubr.bf16.gmra.mrb[0].mxu0 %v104
    %v520 = vpop.f32.mrb[0].mxu0
    %v521 = vadd.f32 %v349, %v520
    %v522 = vpop.f32.mrb[0].mxu0
    %v523 = vadd.f32 %v353, %v522
    %v524 = vpop.f32.mrb[0].mxu0
    %v525 = vadd.f32 %v349, %v524
    %v526 = vpop.f32.mrb[0].mxu0
    %v527 = vadd.f32 %v353, %v526
    %528 = vmatprep.mubr.bf16.mxu0 0
    %529 = vmatmul.mubr.bf16.gmra.mrb[0].mxu0 %v105
    %v530 = vpop.f32.mrb[0].mxu0
    %v531 = vadd.f32 %v349, %v530
    %v532 = vpop.f32.mrb[0].mxu0
    %v533 = vadd.f32 %v353, %v532
    %v534 = vpop.f32.mrb[0].mxu0
    %v535 = vadd.f32 %v349, %v534
    %v536 = vpop.f32.mrb[0].mxu0
    %v537 = vadd.f32 %v353, %v536
    %538 = vmatprep.mubr.bf16.mxu0 0
    %539 = vmatmul.mubr.bf16.gmra.mrb[0].mxu0 %v106
    %v540 = vpop.f32.mrb[0].mxu0
    %v541 = vadd.f32 %v349, %v540
    %v542 = vpop.f32.mrb[0].mxu0
    %v543 = vadd.f32 %v353, %v542
    %v544 = vpop.f32.mrb[0].mxu0
    %v545 = vadd.f32 %v349, %v544
    %v546 = vpop.f32.mrb[0].mxu0
    %v547 = vadd.f32 %v353, %v546
    %548 = vdwg.mxu0
    %v549 = vmul.f32 %v471, 0.5
    %v550 = vmul.f32 %v473, 0.5
    %v551 = vmul.f32 %v475, 0.5
    %v552 = vmul.f32 %v477, 0.5
    %v553 = vmul.f32 %v481, 0.5
    %v554 = vmul.f32 %v483, 0.5
    %v555 = vmul.f32 %v485, 0.5
    %v556 = vmul.f32 %v487, 0.5
    %v557 = vmul.f32 %v491, 0.5
    %v558 = vmul.f32 %v493, 0.5
    %v559 = vmul.f32 %v495, 0.5
    %v560 = vmul.f32 %v497, 0.5
    %v561 = vmul.f32 %v501, 0.5
    %v562 = vmul.f32 %v503, 0.5
    %v563 = vmul.f32 %v505, 0.5
    %v564 = vmul.f32 %v507, 0.5
    %v565 = vmul.f32 %v511, 0.5
    %v566 = vmul.f32 %v513, 0.5
    %v567 = vmul.f32 %v515, 0.5
    %v568 = vmul.f32 %v517, 0.5
    %v569 = vmul.f32 %v521, 0.5
    %v570 = vmul.f32 %v523, 0.5
    %v571 = vmul.f32 %v525, 0.5
    %v572 = vmul.f32 %v527, 0.5
    %v573 = vmul.f32 %v531, 0.5
    %v574 = vmul.f32 %v533, 0.5
    %v575 = vmul.f32 %v535, 0.5
    %v576 = vmul.f32 %v537, 0.5
    %v577 = vmul.f32 %v541, 0.5
    %v578 = vmul.f32 %v543, 0.5
    %v579 = vmul.f32 %v545, 0.5
    %v580 = vmul.f32 %v547, 0.5
    %v581 = vmul.f32 %v471, 0.70710677
    %v582 = vmul.f32 %v473, 0.70710677
    %v583 = vmul.f32 %v475, 0.70710677
    %v584 = vmul.f32 %v477, 0.70710677
    %v585 = vmul.f32 %v481, 0.70710677
    %v586 = vmul.f32 %v483, 0.70710677
    %v587 = vmul.f32 %v485, 0.70710677
    %v588 = vmul.f32 %v487, 0.70710677
    %v589 = vmul.f32 %v491, 0.70710677
    %v590 = vmul.f32 %v493, 0.70710677
    %v591 = vmul.f32 %v495, 0.70710677
    %v592 = vmul.f32 %v497, 0.70710677
    %v593 = vmul.f32 %v501, 0.70710677
    %v594 = vmul.f32 %v503, 0.70710677
    %v595 = vmul.f32 %v505, 0.70710677
    %v596 = vmul.f32 %v507, 0.70710677
    %v597 = vmul.f32 %v511, 0.70710677
    %v598 = vmul.f32 %v513, 0.70710677
    %v599 = vmul.f32 %v515, 0.70710677
    %v600 = vmul.f32 %v517, 0.70710677
    %v601 = vmul.f32 %v521, 0.70710677
    %v602 = vmul.f32 %v523, 0.70710677
    %v603 = vmul.f32 %v525, 0.70710677
    %v604 = vmul.f32 %v527, 0.70710677
    %v605 = vmul.f32 %v531, 0.70710677
    %v606 = vmul.f32 %v533, 0.70710677
    %v607 = vmul.f32 %v535, 0.70710677
    %v608 = vmul.f32 %v537, 0.70710677
    %v609 = vmul.f32 %v541, 0.70710677
    %v610 = vmul.f32 %v543, 0.70710677
    %v611 = vmul.f32 %v545, 0.70710677
    %v612 = vmul.f32 %v547, 0.70710677
    %v613 = verf.f32.pop %v581
    %v614 = verf.f32.pop %v582
    %v615 = verf.f32.pop %v583
    %v616 = verf.f32.pop %v584
    %v617 = verf.f32.pop %v585
    %v618 = verf.f32.pop %v586
    %v619 = verf.f32.pop %v587
    %v620 = verf.f32.pop %v588
    %v621 = verf.f32.pop %v589
    %v622 = verf.f32.pop %v590
    %v623 = verf.f32.pop %v591
    %v624 = verf.f32.pop %v592
    %v625 = verf.f32.pop %v593
    %v626 = verf.f32.pop %v594
    %v627 = verf.f32.pop %v595
    %v628 = verf.f32.pop %v596
    %v629 = verf.f32.pop %v597
    %v630 = verf.f32.pop %v598
    %v631 = verf.f32.pop %v599
    %v632 = verf.f32.pop %v600
    %v633 = verf.f32.pop %v601
    %v634 = verf.f32.pop %v602
    %v635 = verf.f32.pop %v603
    %v636 = verf.f32.pop %v604
    %v637 = verf.f32.pop %v605
    %v638 = verf.f32.pop %v606
    %v639 = verf.f32.pop %v607
    %v640 = verf.f32.pop %v608
    %v641 = verf.f32.pop %v609
    %v642 = verf.f32.pop %v610
    %v643 = verf.f32.pop %v611
    %v644 = verf.f32.pop %v612
    %v645 = vadd.f32 %v613, 1.0
    %v646 = vadd.f32 %v614, 1.0
    %v647 = vadd.f32 %v615, 1.0
    %v648 = vadd.f32 %v616, 1.0
    %v649 = vadd.f32 %v617, 1.0
    %v650 = vadd.f32 %v618, 1.0
    %v651 = vadd.f32 %v619, 1.0
    %v652 = vadd.f32 %v620, 1.0
    %v653 = vadd.f32 %v621, 1.0
    %v654 = vadd.f32 %v622, 1.0
    %v655 = vadd.f32 %v623, 1.0
    %v656 = vadd.f32 %v624, 1.0
    %v657 = vadd.f32 %v625, 1.0
    %v658 = vadd.f32 %v626, 1.0
    %v659 = vadd.f32 %v627, 1.0
    %v660 = vadd.f32 %v628, 1.0
    %v661 = vadd.f32 %v629, 1.0
    %v662 = vadd.f32 %v630, 1.0
    %v663 = vadd.f32 %v631, 1.0
    %v664 = vadd.f32 %v632, 1.0
    %v665 = vadd.f32 %v633, 1.0
    %v666 = vadd.f32 %v634, 1.0
    %v667 = vadd.f32 %v635, 1.0
    %v668 = vadd.f32 %v636, 1.0
    %v669 = vadd.f32 %v637, 1.0
    %v670 = vadd.f32 %v638, 1.0
    %v671 = vadd.f32 %v639, 1.0
    %v672 = vadd.f32 %v640, 1.0
    %v673 = vadd.f32 %v641, 1.0
    %v674 = vadd.f32 %v642, 1.0
    %v675 = vadd.f32 %v643, 1.0
    %v676 = vadd.f32 %v644, 1.0
    %v677 = vmul.f32 %v549, %v645
    %v678 = vmul.f32 %v550, %v646
    %v679 = vmul.f32 %v551, %v647
    %v680 = vmul.f32 %v552, %v648
    %v681 = vmul.f32 %v553, %v649
    %v682 = vmul.f32 %v554, %v650
    %v683 = vmul.f32 %v555, %v651
    %v684 = vmul.f32 %v556, %v652
    %v685 = vmul.f32 %v557, %v653
    %v686 = vmul.f32 %v558, %v654
    %v687 = vmul.f32 %v559, %v655
    %v688 = vmul.f32 %v560, %v656
    %v689 = vmul.f32 %v561, %v657
    %v690 = vmul.f32 %v562, %v658
    %v691 = vmul.f32 %v563, %v659
    %v692 = vmul.f32 %v564, %v660
    %v693 = vmul.f32 %v565, %v661
    %v694 = vmul.f32 %v566, %v662
    %v695 = vmul.f32 %v567, %v663
    %v696 = vmul.f32 %v568, %v664
    %v697 = vmul.f32 %v569, %v665
    %v698 = vmul.f32 %v570, %v666
    %v699 = vmul.f32 %v571, %v667
    %v700 = vmul.f32 %v572, %v668
    %v701 = vmul.f32 %v573, %v669
    %v702 = vmul.f32 %v574, %v670
    %v703 = vmul.f32 %v575, %v671
    %v704 = vmul.f32 %v576, %v672
    %v705 = vmul.f32 %v577, %v673
    %v706 = vmul.f32 %v578, %v674
    %v707 = vmul.f32 %v579, %v675
    %v708 = vmul.f32 %v580, %v676
    %v709 = vmul.f32 %v250, %v677
    %v710 = vmul.f32 %v252, %v678
    %v711 = vmul.f32 %v254, %v679
    %v712 = vmul.f32 %v256, %v680
    %v713 = vmul.f32 %v260, %v681
    %v714 = vmul.f32 %v262, %v682
    %v715 = vmul.f32 %v264, %v683
    %v716 = vmul.f32 %v266, %v684
    %v717 = vmul.f32 %v270, %v685
    %v718 = vmul.f32 %v272, %v686
    %v719 = vmul.f32 %v274, %v687
    %v720 = vmul.f32 %v276, %v688
    %v721 = vmul.f32 %v280, %v689
    %v722 = vmul.f32 %v282, %v690
    %v723 = vmul.f32 %v284, %v691
    %v724 = vmul.f32 %v286, %v692
    %v725 = vmul.f32 %v290, %v693
    %v726 = vmul.f32 %v292, %v694
    %v727 = vmul.f32 %v294, %v695
    %v728 = vmul.f32 %v296, %v696
    %v729 = vmul.f32 %v300, %v697
    %v730 = vmul.f32 %v302, %v698
    %v731 = vmul.f32 %v304, %v699
    %v732 = vmul.f32 %v306, %v700
    %v733 = vmul.f32 %v310, %v701
    %v734 = vmul.f32 %v312, %v702
    %v735 = vmul.f32 %v314, %v703
    %v736 = vmul.f32 %v316, %v704
    %v737 = vmul.f32 %v320, %v705
    %v738 = vmul.f32 %v322, %v706
    %v739 = vmul.f32 %v324, %v707
    %v740 = vmul.f32 %v326, %v708
    %v741 = vpack.c.bf16 %v711, %v709
    %v742 = vpack.c.bf16 %v712, %v710
    %v743 = vpack.c.bf16 %v715, %v713
    %v744 = vpack.c.bf16 %v716, %v714
    %v745 = vpack.c.bf16 %v719, %v717
    %v746 = vpack.c.bf16 %v720, %v718
    %v747 = vpack.c.bf16 %v723, %v721
    %v748 = vpack.c.bf16 %v724, %v722
    %v749 = vpack.c.bf16 %v727, %v725
    %v750 = vpack.c.bf16 %v728, %v726
    %v751 = vpack.c.bf16 %v731, %v729
    %v752 = vpack.c.bf16 %v732, %v730
    %v753 = vpack.c.bf16 %v735, %v733
    %v754 = vpack.c.bf16 %v736, %v734
    %v755 = vpack.c.bf16 %v739, %v737
    %v756 = vpack.c.bf16 %v740, %v738
    %v757 = vld [vmem:[#allocation8] sm:$0xf]
    %v758 = vld [vmem:[#allocation8 + $0x4] sm:$0xf]
    %v759 = vld [vmem:[#allocation8 + $0x8] sm:$0xf]
    %v760 = vld [vmem:[#allocation8 + $0xc] sm:$0xf]
    %v761 = vld [vmem:[#allocation8 + $0x10] sm:$0xf]
    %v762 = vld [vmem:[#allocation8 + $0x14] sm:$0xf]
    %v763 = vld [vmem:[#allocation8 + $0x18] sm:$0xf]
    %v764 = vld [vmem:[#allocation8 + $0x1c] sm:$0xf]
    %v765 = vld [vmem:[#allocation8 + $0x20] sm:$0xf]
    %v766 = vld [vmem:[#allocation8 + $0x24] sm:$0xf]
    %v767 = vld [vmem:[#allocation8 + $0x28] sm:$0xf]
    %v768 = vld [vmem:[#allocation8 + $0x2c] sm:$0xf]
    %v769 = vld [vmem:[#allocation8 + $0x30] sm:$0xf]
    %v770 = vld [vmem:[#allocation8 + $0x34] sm:$0xf]
    %v771 = vld [vmem:[#allocation8 + $0x38] sm:$0xf]
    %v772 = vld [vmem:[#allocation8 + $0x3c] sm:$0xf]
    %v773 = vld [vmem:[#allocation8 + $0x40] sm:$0xf]
    %v774 = vld [vmem:[#allocation8 + $0x44] sm:$0xf]
    %v775 = vld [vmem:[#allocation8 + $0x48] sm:$0xf]
    %v776 = vld [vmem:[#allocation8 + $0x4c] sm:$0xf]
    %v777 = vld [vmem:[#allocation8 + $0x50] sm:$0xf]
    %v778 = vld [vmem:[#allocation8 + $0x54] sm:$0xf]
    %v779 = vld [vmem:[#allocation8 + $0x58] sm:$0xf]
    %v780 = vld [vmem:[#allocation8 + $0x5c] sm:$0xf]
    %v781 = vld [vmem:[#allocation8 + $0x60] sm:$0xf]
    %v782 = vld [vmem:[#allocation8 + $0x64] sm:$0xf]
    %v783 = vld [vmem:[#allocation8 + $0x68] sm:$0xf]
    %v784 = vld [vmem:[#allocation8 + $0x6c] sm:$0xf]
    %v785 = vld [vmem:[#allocation8 + $0x70] sm:$0xf]
    %v786 = vld [vmem:[#allocation8 + $0x74] sm:$0xf]
    %v787 = vld [vmem:[#allocation8 + $0x78] sm:$0xf]
    %v788 = vld [vmem:[#allocation8 + $0x7c] sm:$0xf]
    %v789 = vld [vmem:[%s6] sm:$0x1]
    %v791 = vlaneseq
    %v792 = vshrl.u32 %v791, 7
    %v793 = vsub.s32 0, %v792
    %v794 = vrot.slane %v789, %v793
    %v828 = vunpack.c.l.b16 %v757
    %v829 = vunpack.c.l.b16 %v758
    %v830 = vunpack.c.l.b16 %v759
    %v831 = vunpack.c.l.b16 %v760
    %v832 = vunpack.c.l.b16 %v761
    %v833 = vunpack.c.l.b16 %v762
    %v834 = vunpack.c.l.b16 %v763
    %v835 = vunpack.c.l.b16 %v764
    %v836 = vunpack.c.l.b16 %v765
    %v837 = vunpack.c.l.b16 %v766
    %v838 = vunpack.c.l.b16 %v767
    %v839 = vunpack.c.l.b16 %v768
    %v840 = vunpack.c.l.b16 %v769
    %v841 = vunpack.c.l.b16 %v770
    %v842 = vunpack.c.l.b16 %v771
    %v843 = vunpack.c.l.b16 %v772
    %v844 = vunpack.c.l.b16 %v773
    %v845 = vunpack.c.l.b16 %v774
    %v846 = vunpack.c.l.b16 %v775
    %v847 = vunpack.c.l.b16 %v776
    %v848 = vunpack.c.l.b16 %v777
    %v849 = vunpack.c.l.b16 %v778
    %v850 = vunpack.c.l.b16 %v779
    %v851 = vunpack.c.l.b16 %v780
    %v852 = vunpack.c.l.b16 %v781
    %v853 = vunpack.c.l.b16 %v782
    %v854 = vunpack.c.l.b16 %v783
    %v855 = vunpack.c.l.b16 %v784
    %v856 = vunpack.c.l.b16 %v785
    %v857 = vunpack.c.l.b16 %v786
    %v858 = vunpack.c.l.b16 %v787
    %v859 = vunpack.c.l.b16 %v788
    %v860 = vpack.c.b16 %v829, %v828
    %v861 = vpack.c.b16 %v831, %v830
    %v862 = vpack.c.b16 %v833, %v832
    %v863 = vpack.c.b16 %v835, %v834
    %v864 = vpack.c.b16 %v837, %v836
    %v865 = vpack.c.b16 %v839, %v838
    %v866 = vpack.c.b16 %v841, %v840
    %v867 = vpack.c.b16 %v843, %v842
    %v868 = vpack.c.b16 %v845, %v844
    %v869 = vpack.c.b16 %v847, %v846
    %v870 = vpack.c.b16 %v849, %v848
    %v871 = vpack.c.b16 %v851, %v850
    %v872 = vpack.c.b16 %v853, %v852
    %v873 = vpack.c.b16 %v855, %v854
    %v874 = vpack.c.b16 %v857, %v856
    %v875 = vpack.c.b16 %v859, %v858
    %892 = vmatprep.subr.bf16.mxu0 0
    %893 = vmatpush1.bf16.msra.mxu0 %v860
    %894 = vmatprep.subr.bf16.mxu0 0
    %895 = vmatpush1.bf16.msra.mxu0 %v861
    %896 = vmatprep.subr.bf16.mxu0 0
    %897 = vmatpush1.bf16.msra.mxu0 %v862
    %898 = vmatprep.subr.bf16.mxu0 0
    %899 = vmatpush1.bf16.msra.mxu0 %v863
    %900 = vmatprep.subr.bf16.mxu0 0
    %901 = vmatpush1.bf16.msra.mxu0 %v864
    %902 = vmatprep.subr.bf16.mxu0 0
    %903 = vmatpush1.bf16.msra.mxu0 %v865
    %904 = vmatprep.subr.bf16.mxu0 0
    %905 = vmatpush1.bf16.msra.mxu0 %v866
    %906 = vmatprep.subr.bf16.mxu0 0
    %907 = vmatpush1.bf16.msra.mxu0 %v867
    %908 = vmatprep.subr.bf16.mxu0 0
    %909 = vmatpush1.bf16.msra.mxu0 %v868
    %910 = vmatprep.subr.bf16.mxu0 0
    %911 = vmatpush1.bf16.msra.mxu0 %v869
    %912 = vmatprep.subr.bf16.mxu0 0
    %913 = vmatpush1.bf16.msra.mxu0 %v870
    %914 = vmatprep.subr.bf16.mxu0 0
    %915 = vmatpush1.bf16.msra.mxu0 %v871
    %916 = vmatprep.subr.bf16.mxu0 0
    %917 = vmatpush1.bf16.msra.mxu0 %v872
    %918 = vmatprep.subr.bf16.mxu0 0
    %919 = vmatpush1.bf16.msra.mxu0 %v873
    %920 = vmatprep.subr.bf16.mxu0 0
    %921 = vmatpush1.bf16.msra.mxu0 %v874
    %922 = vmatprep.subr.bf16.mxu0 0
    %923 = vmatpush1.bf16.msra.mxu0 %v875
    %924 = vmatprep.mubr.bf16.mxu0 %v742
    %925 = vmatmul.mubr.bf16.gmra.mrb[0].mxu0 %v741
    %v926 = vpop.f32.mrb[0].mxu0
    %v927 = vadd.f32 %v794, %v926
    %v928 = vpop.f32.mrb[0].mxu0
    %v929 = vpop.f32.mrb[0].mxu0
    %v930 = vadd.f32 %v794, %v929
    %v931 = vpop.f32.mrb[0].mxu0
    %932 = vmatprep.mubr.bf16.mxu0 %v744
    %933 = vmatmul.mubr.bf16.gmra.mrb[0].mxu0 %v743
    %v934 = vpop.f32.mrb[0].mxu0
    %v935 = vadd.f32 %v794, %v934
    %v936 = vpop.f32.mrb[0].mxu0
    %v937 = vpop.f32.mrb[0].mxu0
    %v938 = vadd.f32 %v794, %v937
    %v939 = vpop.f32.mrb[0].mxu0
    %940 = vmatprep.mubr.bf16.mxu0 %v746
    %941 = vmatmul.mubr.bf16.gmra.mrb[0].mxu0 %v745
    %v942 = vpop.f32.mrb[0].mxu0
    %v943 = vadd.f32 %v794, %v942
    %v944 = vpop.f32.mrb[0].mxu0
    %v945 = vpop.f32.mrb[0].mxu0
    %v946 = vadd.f32 %v794, %v945
    %v947 = vpop.f32.mrb[0].mxu0
    %948 = vmatprep.mubr.bf16.mxu0 %v748
    %949 = vmatmul.mubr.bf16.gmra.mrb[0].mxu0 %v747
    %v950 = vpop.f32.mrb[0].mxu0
    %v951 = vadd.f32 %v794, %v950
    %v952 = vpop.f32.mrb[0].mxu0
    %v953 = vpop.f32.mrb[0].mxu0
    %v954 = vadd.f32 %v794, %v953
    %v955 = vpop.f32.mrb[0].mxu0
    %956 = vmatprep.mubr.bf16.mxu0 %v750
    %957 = vmatmul.mubr.bf16.gmra.mrb[0].mxu0 %v749
    %v958 = vpop.f32.mrb[0].mxu0
    %v959 = vadd.f32 %v794, %v958
    %v960 = vpop.f32.mrb[0].mxu0
    %v961 = vpop.f32.mrb[0].mxu0
    %v962 = vadd.f32 %v794, %v961
    %v963 = vpop.f32.mrb[0].mxu0
    %964 = vmatprep.mubr.bf16.mxu0 %v752
    %965 = vmatmul.mubr.bf16.gmra.mrb[0].mxu0 %v751
    %v966 = vpop.f32.mrb[0].mxu0
    %v967 = vadd.f32 %v794, %v966
    %v968 = vpop.f32.mrb[0].mxu0
    %v969 = vpop.f32.mrb[0].mxu0
    %v970 = vadd.f32 %v794, %v969
    %v971 = vpop.f32.mrb[0].mxu0
    %972 = vmatprep.mubr.bf16.mxu0 %v754
    %973 = vmatmul.mubr.bf16.gmra.mrb[0].mxu0 %v753
    %v974 = vpop.f32.mrb[0].mxu0
    %v975 = vadd.f32 %v794, %v974
    %v976 = vpop.f32.mrb[0].mxu0
    %v977 = vpop.f32.mrb[0].mxu0
    %v978 = vadd.f32 %v794, %v977
    %v979 = vpop.f32.mrb[0].mxu0
    %980 = vmatprep.mubr.bf16.mxu0 %v756
    %981 = vmatmul.mubr.bf16.gmra.mrb[0].mxu0 %v755
    %v982 = vpop.f32.mrb[0].mxu0
    %v983 = vadd.f32 %v794, %v982
    %v984 = vpop.f32.mrb[0].mxu0
    %v985 = vpop.f32.mrb[0].mxu0
    %v986 = vadd.f32 %v794, %v985
    %v987 = vpop.f32.mrb[0].mxu0
    %988 = vdwg.mxu0
    %989 = vst [vmem:[#allocation10] sm:$0xff] %v927
    %990 = vst [vmem:[#allocation10 + $0x8] sm:$0xff] %v930
    %991 = vst [vmem:[#allocation10 + $0x10] sm:$0xff] %v935
    %992 = vst [vmem:[#allocation10 + $0x18] sm:$0xff] %v938
    %993 = vst [vmem:[#allocation10 + $0x20] sm:$0xff] %v943
    %994 = vst [vmem:[#allocation10 + $0x28] sm:$0xff] %v946
    %995 = vst [vmem:[#allocation10 + $0x30] sm:$0xff] %v951
    %996 = vst [vmem:[#allocation10 + $0x38] sm:$0xff] %v954
    %997 = vst [vmem:[#allocation10 + $0x40] sm:$0xff] %v959
    %998 = vst [vmem:[#allocation10 + $0x48] sm:$0xff] %v962
    %999 = vst [vmem:[#allocation10 + $0x50] sm:$0xff] %v967
    %1000 = vst [vmem:[#allocation10 + $0x58] sm:$0xff] %v970
    %1001 = vst [vmem:[#allocation10 + $0x60] sm:$0xff] %v975
    %1002 = vst [vmem:[#allocation10 + $0x68] sm:$0xff] %v978
    %1003 = vst [vmem:[#allocation10 + $0x70] sm:$0xff] %v983
    %1004 = vst [vmem:[#allocation10 + $0x78] sm:$0xff] %v986
    // Predicated region
    $region46: #{tpu_custom_call.1} parent=1 // pred_check
      _
    $region47: #{tpu_custom_call.1} parent=1 // pred_check_branch
      %1006 = sbr.rel (0) target = $region49
    $region48: #{tpu_custom_call.1} parent=1 // pred_region
      %s1008 = ssub.s32 2048, 2048
      %1009 = vsyncadd [#allocation4], %s1008
      %s1010 = sshll.u32 [#allocation10], 4
      %s1011 = int_to_ptr.vmem [resolvable:$true] %s1010
      %1016 = dma.vmem_to_hbm [thread:$0]  %s1011, 2048, %s7, [#allocation4], 128, 128, 8
    $region49: #{tpu_custom_call.1} parent=1 // pred_fallthru
      _
    // Predicated region
    $region50: #{tpu_custom_call.1} parent=1 // pred_check
      _
    $region51: #{tpu_custom_call.1} parent=1 // pred_check_branch
      %1018 = sbr.rel (0) target = $region53
    $region52: #{tpu_custom_call.1} parent=1 // pred_region
      %1019 = dma.done [#allocation4], 2048
    $region53: #{tpu_custom_call.1} parent=1 // pred_fallthru
      _
    %1020 = vsyncpa [#allocation3], 1
    %1021 = vsyncpa [#allocation6], 1
    %1022 = vsyncpa [#allocation9], 1
    %1023 = vsyncpa [#allocation4], 1

// kernel: tpu_custom_call.1
$region0: #{tpu_custom_call.1}
  #allocation0 [shape = 'u32[]', space=smem, size = 0x4, offset = 0x4, fixed_abs, tag = 'smem constant byte address 0x4 - core index']
  #allocation1 [shape = 'u32[144,128]{1,0:T(1,128)}', space=vmem, size = 0x12000, scoped, tag = 'internal scratch']
  %s0 = inlined_call_operand.hbm [shape: f32[128,128], index: 0, kind: input, shape index: {}]
  %s1 = inlined_call_operand.hbm [shape: bf16[128,256], index: 1, kind: input, shape index: {}]
  %s2 = inlined_call_operand.hbm [shape: bf16[128,256], index: 2, kind: input, shape index: {}]
  %s3 = inlined_call_operand.vmem [shape: f32[1,256], index: 3, kind: input, shape index: {}]
  %s4 = inlined_call_operand.vmem [shape: f32[1,256], index: 4, kind: input, shape index: {}]
  %s5 = inlined_call_operand.hbm [shape: bf16[256,128], index: 5, kind: input, shape index: {}]
  %s6 = inlined_call_operand.vmem [shape: f32[1,128], index: 6, kind: input, shape index: {}]
  %s7 = inlined_call_operand.hbm [shape: f32[128,128], index: 7, kind: output, shape index: {}]
  %s8 = sld [smem:[#allocation0]]
  $region54: #{tpu_custom_call.1} parent=0
    _
  %s10 = ssub.s32 1, %s8
  %s11 = scalar_select 0, %s10, %s8
  $region1: #{tpu_custom_call.1} parent=0
    #allocation2 [shape = 'u8[65536]{0}', space=vmem, size = 0x10000, scoped, tag = 'input window, operand 0, single buffered']
    #allocation3 [shape = 's32[1]{0}', space=sflag, size = 0x4, scoped, tag = 'scoped memory for tpu_custom_call.1']
    #allocation4 [shape = 's32[1]{0}', space=sflag, size = 0x4, scoped, tag = 'scoped memory for tpu_custom_call.1']
    #allocation5 [shape = 'u8[65536]{0}', space=vmem, size = 0x10000, scoped, tag = 'input window, operand 1, single buffered']
    #allocation6 [shape = 's32[1]{0}', space=sflag, size = 0x4, scoped, tag = 'scoped memory for tpu_custom_call.1']
    #allocation7 [shape = 'u8[65536]{0}', space=vmem, size = 0x10000, scoped, tag = 'input window, operand 2, single buffered']
    #allocation8 [shape = 'u8[65536]{0}', space=vmem, size = 0x10000, scoped, tag = 'input window, operand 5, single buffered']
    #allocation9 [shape = 's32[1]{0}', space=sflag, size = 0x4, scoped, tag = 'scoped memory for tpu_custom_call.1']
    #allocation10 [shape = 'u8[65536]{0}', space=vmem, size = 0x10000, scoped, tag = 'output window, operand 0, single buffered']
    %12 = vsyncpa [#allocation3], 0
    %13 = vsyncpa [#allocation6], 0
    %14 = vsyncpa [#allocation9], 0
    %15 = vsyncpa [#allocation4], 0
    // Predicated region
    $region2: #{tpu_custom_call.1} parent=1 // pred_check
      _
    $region3: #{tpu_custom_call.1} parent=1 // pred_check_branch
      %17 = sbr.rel (0) target = $region5
    $region4: #{tpu_custom_call.1} parent=1 // pred_region
      %s19 = ssub.s32 2048, 2048
      %20 = vsyncadd [#allocation3], %s19
      %s21 = sshll.u32 [#allocation2], 4
      %s22 = int_to_ptr.vmem [resolvable:$true] %s21
      %27 = dma.hbm_to_vmem [thread:$0]  %s0, 2048, %s22, [#allocation3], 128, 128, 8
    $region5: #{tpu_custom_call.1} parent=1 // pred_fallthru
      _
    // Predicated region
    $region6: #{tpu_custom_call.1} parent=1 // pred_check
      _
    $region7: #{tpu_custom_call.1} parent=1 // pred_check_branch
      %29 = sbr.rel (0) target = $region9
    $region8: #{tpu_custom_call.1} parent=1 // pred_region
      %s31 = ssub.s32 2048, 2048
      %32 = vsyncadd [#allocation6], %s31
      %s33 = sshll.u32 [#allocation5], 4
      %s34 = int_to_ptr.vmem [resolvable:$true] %s33
      %39 = dma.hbm_to_vmem [thread:$0]  %s1, 2048, %s34, [#allocation6], 128, 128, 8
    $region9: #{tpu_custom_call.1} parent=1 // pred_fallthru
      _
    // Predicated region
    $region10: #{tpu_custom_call.1} parent=1 // pred_check
      _
    $region11: #{tpu_custom_call.1} parent=1 // pred_check_branch
      %41 = sbr.rel (0) target = $region13
    $region12: #{tpu_custom_call.1} parent=1 // pred_region
      %s43 = ssub.s32 2048, 2048
      %44 = vsyncadd [#allocation6], %s43
      %s45 = sshll.u32 [#allocation7], 4
      %s46 = int_to_ptr.vmem [resolvable:$true] %s45
      %51 = dma.hbm_to_vmem [thread:$0]  %s2, 2048, %s46, [#allocation6], 128, 128, 8
    $region13: #{tpu_custom_call.1} parent=1 // pred_fallthru
      _
    // Predicated region
    $region14: #{tpu_custom_call.1} parent=1 // pred_check
      _
    $region15: #{tpu_custom_call.1} parent=1 // pred_check_branch
      %53 = sbr.rel (0) target = $region17
    $region16: #{tpu_custom_call.1} parent=1 // pred_region
      _
    $region17: #{tpu_custom_call.1} parent=1 // pred_fallthru
      _
    // Predicated region
    $region18: #{tpu_custom_call.1} parent=1 // pred_check
      _
    $region19: #{tpu_custom_call.1} parent=1 // pred_check_branch
      %55 = sbr.rel (0) target = $region21
    $region20: #{tpu_custom_call.1} parent=1 // pred_region
      _
    $region21: #{tpu_custom_call.1} parent=1 // pred_fallthru
      _
    // Predicated region
    $region22: #{tpu_custom_call.1} parent=1 // pred_check
      _
    $region23: #{tpu_custom_call.1} parent=1 // pred_check_branch
      %57 = sbr.rel (0) target = $region25
    $region24: #{tpu_custom_call.1} parent=1 // pred_region
      %s59 = ssub.s32 2048, 2048
      %60 = vsyncadd [#allocation9], %s59
      %s61 = sshll.u32 [#allocation8], 4
      %s62 = int_to_ptr.vmem [resolvable:$true] %s61
      %67 = dma.hbm_to_vmem [thread:$0]  %s5, 2048, %s62, [#allocation9], 64, 64, 4
    $region25: #{tpu_custom_call.1} parent=1 // pred_fallthru
      _
    // Predicated region
    $region26: #{tpu_custom_call.1} parent=1 // pred_check
      _
    $region27: #{tpu_custom_call.1} parent=1 // pred_check_branch
      %69 = sbr.rel (0) target = $region29
    $region28: #{tpu_custom_call.1} parent=1 // pred_region
      _
    $region29: #{tpu_custom_call.1} parent=1 // pred_fallthru
      _
    // Predicated region
    $region30: #{tpu_custom_call.1} parent=1 // pred_check
      _
    $region31: #{tpu_custom_call.1} parent=1 // pred_check_branch
      %71 = sbr.rel (0) target = $region33
    $region32: #{tpu_custom_call.1} parent=1 // pred_region
      %72 = dma.done [#allocation3], 2048
    $region33: #{tpu_custom_call.1} parent=1 // pred_fallthru
      _
    // Predicated region
    $region34: #{tpu_custom_call.1} parent=1 // pred_check
      _
    $region35: #{tpu_custom_call.1} parent=1 // pred_check_branch
      %74 = sbr.rel (0) target = $region37
    $region36: #{tpu_custom_call.1} parent=1 // pred_region
      %75 = dma.done [#allocation6], 2048
    $region37: #{tpu_custom_call.1} parent=1 // pred_fallthru
      _
    // Predicated region
    $region38: #{tpu_custom_call.1} parent=1 // pred_check
      _
    $region39: #{tpu_custom_call.1} parent=1 // pred_check_branch
      %77 = sbr.rel (0) target = $region41
    $region40: #{tpu_custom_call.1} parent=1 // pred_region
      %78 = dma.done [#allocation6], 2048
    $region41: #{tpu_custom_call.1} parent=1 // pred_fallthru
      _
    // Predicated region
    $region42: #{tpu_custom_call.1} parent=1 // pred_check
      _
    $region43: #{tpu_custom_call.1} parent=1 // pred_check_branch
      %80 = sbr.rel (0) target = $region45
    $region44: #{tpu_custom_call.1} parent=1 // pred_region
      %81 = dma.done [#allocation9], 2048
    $region45: #{tpu_custom_call.1} parent=1 // pred_fallthru
      _
    %v83 = vld [vmem:[#allocation2] sm:$0xff]
    %v84 = vld [vmem:[#allocation2 + $0x8] sm:$0xff]
    %v85 = vld [vmem:[#allocation2 + $0x10] sm:$0xff]
    %v86 = vld [vmem:[#allocation2 + $0x18] sm:$0xff]
    %v87 = vld [vmem:[#allocation2 + $0x20] sm:$0xff]
    %v88 = vld [vmem:[#allocation2 + $0x28] sm:$0xff]
    %v89 = vld [vmem:[#allocation2 + $0x30] sm:$0xff]
    %v90 = vld [vmem:[#allocation2 + $0x38] sm:$0xff]
    %v91 = vld [vmem:[#allocation2 + $0x40] sm:$0xff]
    %v92 = vld [vmem:[#allocation2 + $0x48] sm:$0xff]
    %v93 = vld [vmem:[#allocation2 + $0x50] sm:$0xff]
    %v94 = vld [vmem:[#allocation2 + $0x58] sm:$0xff]
    %v95 = vld [vmem:[#allocation2 + $0x60] sm:$0xff]
    %v96 = vld [vmem:[#allocation2 + $0x68] sm:$0xff]
    %v97 = vld [vmem:[#allocation2 + $0x70] sm:$0xff]
    %v98 = vld [vmem:[#allocation2 + $0x78] sm:$0xff]
    %v99 = vpack.c.bf16 %v84, %v83
    %v100 = vpack.c.bf16 %v86, %v85
    %v101 = vpack.c.bf16 %v88, %v87
    %v102 = vpack.c.bf16 %v90, %v89
    %v103 = vpack.c.bf16 %v92, %v91
    %v104 = vpack.c.bf16 %v94, %v93
    %v105 = vpack.c.bf16 %v96, %v95
    %v106 = vpack.c.bf16 %v98, %v97
    %v107 = vld [vmem:[#allocation5] sm:$0xff]
    %v108 = vld [vmem:[#allocation5 + $0x8] sm:$0xff]
    %v109 = vld [vmem:[#allocation5 + $0x10] sm:$0xff]
    %v110 = vld [vmem:[#allocation5 + $0x18] sm:$0xff]
    %v111 = vld [vmem:[#allocation5 + $0x20] sm:$0xff]
    %v112 = vld [vmem:[#allocation5 + $0x28] sm:$0xff]
    %v113 = vld [vmem:[#allocation5 + $0x30] sm:$0xff]
    %v114 = vld [vmem:[#allocation5 + $0x38] sm:$0xff]
    %v115 = vld [vmem:[#allocation5 + $0x40] sm:$0xff]
    %v116 = vld [vmem:[#allocation5 + $0x48] sm:$0xff]
    %v117 = vld [vmem:[#allocation5 + $0x50] sm:$0xff]
    %v118 = vld [vmem:[#allocation5 + $0x58] sm:$0xff]
    %v119 = vld [vmem:[#allocation5 + $0x60] sm:$0xff]
    %v120 = vld [vmem:[#allocation5 + $0x68] sm:$0xff]
    %v121 = vld [vmem:[#allocation5 + $0x70] sm:$0xff]
    %v122 = vld [vmem:[#allocation5 + $0x78] sm:$0xff]
    %v123 = vld [vmem:[%s3] sm:$0x3]
    %v125 = vlaneseq
    %v126 = vshrl.u32 %v125, 7
    %v127 = vsub.s32 0, %v126
    %v128 = vrot.slane %v123, %v127
    %v129 = vlaneseq
    %v130 = vshrl.u32 %v129, 7
    %v131 = vsub.s32 1, %v130
    %v132 = vrot.slane %v123, %v131
    %v151 = vunpack.c.l.b16 %v107
    %v152 = vunpack.c.h.b16 %v107
    %v153 = vunpack.c.l.b16 %v108
    %v154 = vunpack.c.h.b16 %v108
    %v155 = vunpack.c.l.b16 %v109
    %v156 = vunpack.c.h.b16 %v109
    %v157 = vunpack.c.l.b16 %v110
    %v158 = vunpack.c.h.b16 %v110
    %v159 = vunpack.c.l.b16 %v111
    %v160 = vunpack.c.h.b16 %v111
    %v161 = vunpack.c.l.b16 %v112
    %v162 = vunpack.c.h.b16 %v112
    %v163 = vunpack.c.l.b16 %v113
    %v164 = vunpack.c.h.b16 %v113
    %v165 = vunpack.c.l.b16 %v114
    %v166 = vunpack.c.h.b16 %v114
    %v167 = vunpack.c.l.b16 %v115
    %v168 = vunpack.c.h.b16 %v115
    %v169 = vunpack.c.l.b16 %v116
    %v170 = vunpack.c.h.b16 %v116
    %v171 = vunpack.c.l.b16 %v117
    %v172 = vunpack.c.h.b16 %v117
    %v173 = vunpack.c.l.b16 %v118
    %v174 = vunpack.c.h.b16 %v118
    %v175 = vunpack.c.l.b16 %v119
    %v176 = vunpack.c.h.b16 %v119
    %v177 = vunpack.c.l.b16 %v120
    %v178 = vunpack.c.h.b16 %v120
    %v179 = vunpack.c.l.b16 %v121
    %v180 = vunpack.c.h.b16 %v121
    %v181 = vunpack.c.l.b16 %v122
    %v182 = vunpack.c.h.b16 %v122
    %v183 = vpack.c.b16 %v153, %v151
    %v184 = vpack.c.b16 %v154, %v152
    %v185 = vpack.c.b16 %v157, %v155
    %v186 = vpack.c.b16 %v158, %v156
    %v187 = vpack.c.b16 %v161, %v159
    %v188 = vpack.c.b16 %v162, %v160
    %v189 = vpack.c.b16 %v165, %v163
    %v190 = vpack.c.b16 %v166, %v164
    %v191 = vpack.c.b16 %v169, %v167
    %v192 = vpack.c.b16 %v170, %v168
    %v193 = vpack.c.b16 %v173, %v171
    %v194 = vpack.c.b16 %v174, %v172
    %v195 = vpack.c.b16 %v177, %v175
    %v196 = vpack.c.b16 %v178, %v176
    %v197 = vpack.c.b16 %v181, %v179
    %v198 = vpack.c.b16 %v182, %v180
    %215 = vmatprep.subr.bf16.mxu0 %v184
    %216 = vmatpush1.bf16.msra.mxu0 %v183
    %217 = vmatprep.subr.bf16.mxu0 %v186
    %218 = vmatpush1.bf16.msra.mxu0 %v185
    %219 = vmatprep.subr.bf16.mxu0 %v188
    %220 = vmatpush1.bf16.msra.mxu0 %v187
    %221 = vmatprep.subr.bf16.mxu0 %v190
    %222 = vmatpush1.bf16.msra.mxu0 %v189
    %223 = vmatprep.subr.bf16.mxu0 %v192
    %224 = vmatpush1.bf16.msra.mxu0 %v191
    %225 = vmatprep.subr.bf16.mxu0 %v194
    %226 = vmatpush1.bf16.msra.mxu0 %v193
    %227 = vmatprep.subr.bf16.mxu0 %v196
    %228 = vmatpush1.bf16.msra.mxu0 %v195
    %229 = vmatprep.subr.bf16.mxu0 %v198
    %230 = vmatpush1.bf16.msra.mxu0 %v197
    %231 = vmatprep.subr.bf16.mxu0 0
    %232 = vmatpush1.bf16.msra.mxu0 0
    %233 = vmatprep.subr.bf16.mxu0 0
    %234 = vmatpush1.bf16.msra.mxu0 0
    %235 = vmatprep.subr.bf16.mxu0 0
    %236 = vmatpush1.bf16.msra.mxu0 0
    %237 = vmatprep.subr.bf16.mxu0 0
    %238 = vmatpush1.bf16.msra.mxu0 0
    %239 = vmatprep.subr.bf16.mxu0 0
    %240 = vmatpush1.bf16.msra.mxu0 0
    %241 = vmatprep.subr.bf16.mxu0 0
    %242 = vmatpush1.bf16.msra.mxu0 0
    %243 = vmatprep.subr.bf16.mxu0 0
    %244 = vmatpush1.bf16.msra.mxu0 0
    %245 = vmatprep.subr.bf16.mxu0 0
    %246 = vmatpush1.bf16.msra.mxu0 0
    %247 = vmatprep.mubr.bf16.mxu0 0
    %248 = vmatmul.mubr.bf16.gmra.mrb[0].mxu0 %v99
    %v249 = vpop.f32.mrb[0].mxu0
    %v250 = vadd.f32 %v128, %v249
    %v251 = vpop.f32.mrb[0].mxu0
    %v252 = vadd.f32 %v132, %v251
    %v253 = vpop.f32.mrb[0].mxu0
    %v254 = vadd.f32 %v128, %v253
    %v255 = vpop.f32.mrb[0].mxu0
    %v256 = vadd.f32 %v132, %v255
    %257 = vmatprep.mubr.bf16.mxu0 0
    %258 = vmatmul.mubr.bf16.gmra.mrb[0].mxu0 %v100
    %v259 = vpop.f32.mrb[0].mxu0
    %v260 = vadd.f32 %v128, %v259
    %v261 = vpop.f32.mrb[0].mxu0
    %v262 = vadd.f32 %v132, %v261
    %v263 = vpop.f32.mrb[0].mxu0
    %v264 = vadd.f32 %v128, %v263
    %v265 = vpop.f32.mrb[0].mxu0
    %v266 = vadd.f32 %v132, %v265
    %267 = vmatprep.mubr.bf16.mxu0 0
    %268 = vmatmul.mubr.bf16.gmra.mrb[0].mxu0 %v101
    %v269 = vpop.f32.mrb[0].mxu0
    %v270 = vadd.f32 %v128, %v269
    %v271 = vpop.f32.mrb[0].mxu0
    %v272 = vadd.f32 %v132, %v271
    %v273 = vpop.f32.mrb[0].mxu0
    %v274 = vadd.f32 %v128, %v273
    %v275 = vpop.f32.mrb[0].mxu0
    %v276 = vadd.f32 %v132, %v275
    %277 = vmatprep.mubr.bf16.mxu0 0
    %278 = vmatmul.mubr.bf16.gmra.mrb[0].mxu0 %v102
    %v279 = vpop.f32.mrb[0].mxu0
    %v280 = vadd.f32 %v128, %v279
    %v281 = vpop.f32.mrb[0].mxu0
    %v282 = vadd.f32 %v132, %v281
    %v283 = vpop.f32.mrb[0].mxu0
    %v284 = vadd.f32 %v128, %v283
    %v285 = vpop.f32.mrb[0].mxu0
    %v286 = vadd.f32 %v132, %v285
    %287 = vmatprep.mubr.bf16.mxu0 0
    %288 = vmatmul.mubr.bf16.gmra.mrb[0].mxu0 %v103
    %v289 = vpop.f32.mrb[0].mxu0
    %v290 = vadd.f32 %v128, %v289
    %v291 = vpop.f32.mrb[0].mxu0
    %v292 = vadd.f32 %v132, %v291
    %v293 = vpop.f32.mrb[0].mxu0
    %v294 = vadd.f32 %v128, %v293
    %v295 = vpop.f32.mrb[0].mxu0
    %v296 = vadd.f32 %v132, %v295
    %297 = vmatprep.mubr.bf16.mxu0 0
    %298 = vmatmul.mubr.bf16.gmra.mrb[0].mxu0 %v104
    %v299 = vpop.f32.mrb[0].mxu0
    %v300 = vadd.f32 %v128, %v299
    %v301 = vpop.f32.mrb[0].mxu0
    %v302 = vadd.f32 %v132, %v301
    %v303 = vpop.f32.mrb[0].mxu0
    %v304 = vadd.f32 %v128, %v303
    %v305 = vpop.f32.mrb[0].mxu0
    %v306 = vadd.f32 %v132, %v305
    %307 = vmatprep.mubr.bf16.mxu0 0
    %308 = vmatmul.mubr.bf16.gmra.mrb[0].mxu0 %v105
    %v309 = vpop.f32.mrb[0].mxu0
    %v310 = vadd.f32 %v128, %v309
    %v311 = vpop.f32.mrb[0].mxu0
    %v312 = vadd.f32 %v132, %v311
    %v313 = vpop.f32.mrb[0].mxu0
    %v314 = vadd.f32 %v128, %v313
    %v315 = vpop.f32.mrb[0].mxu0
    %v316 = vadd.f32 %v132, %v315
    %317 = vmatprep.mubr.bf16.mxu0 0
    %318 = vmatmul.mubr.bf16.gmra.mrb[0].mxu0 %v106
    %v319 = vpop.f32.mrb[0].mxu0
    %v320 = vadd.f32 %v128, %v319
    %v321 = vpop.f32.mrb[0].mxu0
    %v322 = vadd.f32 %v132, %v321
    %v323 = vpop.f32.mrb[0].mxu0
    %v324 = vadd.f32 %v128, %v323
    %v325 = vpop.f32.mrb[0].mxu0
    %v326 = vadd.f32 %v132, %v325
    %327 = vdwg.mxu0
    %v328 = vld [vmem:[#allocation7] sm:$0xff]
    %v329 = vld [vmem:[#allocation7 + $0x8] sm:$0xff]
    %v330 = vld [vmem:[#allocation7 + $0x10] sm:$0xff]
    %v331 = vld [vmem:[#allocation7 + $0x18] sm:$0xff]
    %v332 = vld [vmem:[#allocation7 + $0x20] sm:$0xff]
    %v333 = vld [vmem:[#allocation7 + $0x28] sm:$0xff]
    %v334 = vld [vmem:[#allocation7 + $0x30] sm:$0xff]
    %v335 = vld [vmem:[#allocation7 + $0x38] sm:$0xff]
    %v336 = vld [vmem:[#allocation7 + $0x40] sm:$0xff]
    %v337 = vld [vmem:[#allocation7 + $0x48] sm:$0xff]
    %v338 = vld [vmem:[#allocation7 + $0x50] sm:$0xff]
    %v339 = vld [vmem:[#allocation7 + $0x58] sm:$0xff]
    %v340 = vld [vmem:[#allocation7 + $0x60] sm:$0xff]
    %v341 = vld [vmem:[#allocation7 + $0x68] sm:$0xff]
    %v342 = vld [vmem:[#allocation7 + $0x70] sm:$0xff]
    %v343 = vld [vmem:[#allocation7 + $0x78] sm:$0xff]
    %v344 = vld [vmem:[%s4] sm:$0x3]
    %v346 = vlaneseq
    %v347 = vshrl.u32 %v346, 7
    %v348 = vsub.s32 0, %v347
    %v349 = vrot.slane %v344, %v348
    %v350 = vlaneseq
    %v351 = vshrl.u32 %v350, 7
    %v352 = vsub.s32 1, %v351
    %v353 = vrot.slane %v344, %v352
    %v372 = vunpack.c.l.b16 %v328
    %v373 = vunpack.c.h.b16 %v328
    %v374 = vunpack.c.l.b16 %v329
    %v375 = vunpack.c.h.b16 %v329
    %v376 = vunpack.c.l.b16 %v330
    %v377 = vunpack.c.h.b16 %v330
    %v378 = vunpack.c.l.b16 %v331
    %v379 = vunpack.c.h.b16 %v331
    %v380 = vunpack.c.l.b16 %v332
    %v381 = vunpack.c.h.b16 %v332
    %v382 = vunpack.c.l.b16 %v333
    %v383 = vunpack.c.h.b16 %v333
    %v384 = vunpack.c.l.b16 %v334
    %v385 = vunpack.c.h.b16 %v334
    %v386 = vunpack.c.l.b16 %v335
    %v387 = vunpack.c.h.b16 %v335
    %v388 = vunpack.c.l.b16 %v336
    %v389 = vunpack.c.h.b16 %v336
    %v390 = vunpack.c.l.b16 %v337
    %v391 = vunpack.c.h.b16 %v337
    %v392 = vunpack.c.l.b16 %v338
    %v393 = vunpack.c.h.b16 %v338
    %v394 = vunpack.c.l.b16 %v339
    %v395 = vunpack.c.h.b16 %v339
    %v396 = vunpack.c.l.b16 %v340
    %v397 = vunpack.c.h.b16 %v340
    %v398 = vunpack.c.l.b16 %v341
    %v399 = vunpack.c.h.b16 %v341
    %v400 = vunpack.c.l.b16 %v342
    %v401 = vunpack.c.h.b16 %v342
    %v402 = vunpack.c.l.b16 %v343
    %v403 = vunpack.c.h.b16 %v343
    %v404 = vpack.c.b16 %v374, %v372
    %v405 = vpack.c.b16 %v375, %v373
    %v406 = vpack.c.b16 %v378, %v376
    %v407 = vpack.c.b16 %v379, %v377
    %v408 = vpack.c.b16 %v382, %v380
    %v409 = vpack.c.b16 %v383, %v381
    %v410 = vpack.c.b16 %v386, %v384
    %v411 = vpack.c.b16 %v387, %v385
    %v412 = vpack.c.b16 %v390, %v388
    %v413 = vpack.c.b16 %v391, %v389
    %v414 = vpack.c.b16 %v394, %v392
    %v415 = vpack.c.b16 %v395, %v393
    %v416 = vpack.c.b16 %v398, %v396
    %v417 = vpack.c.b16 %v399, %v397
    %v418 = vpack.c.b16 %v402, %v400
    %v419 = vpack.c.b16 %v403, %v401
    %436 = vmatprep.subr.bf16.mxu0 %v405
    %437 = vmatpush1.bf16.msra.mxu0 %v404
    %438 = vmatprep.subr.bf16.mxu0 %v407
    %439 = vmatpush1.bf16.msra.mxu0 %v406
    %440 = vmatprep.subr.bf16.mxu0 %v409
    %441 = vmatpush1.bf16.msra.mxu0 %v408
    %442 = vmatprep.subr.bf16.mxu0 %v411
    %443 = vmatpush1.bf16.msra.mxu0 %v410
    %444 = vmatprep.subr.bf16.mxu0 %v413
    %445 = vmatpush1.bf16.msra.mxu0 %v412
    %446 = vmatprep.subr.bf16.mxu0 %v415
    %447 = vmatpush1.bf16.msra.mxu0 %v414
    %448 = vmatprep.subr.bf16.mxu0 %v417
    %449 = vmatpush1.bf16.msra.mxu0 %v416
    %450 = vmatprep.subr.bf16.mxu0 %v419
    %451 = vmatpush1.bf16.msra.mxu0 %v418
    %452 = vmatprep.subr.bf16.mxu0 0
    %453 = vmatpush1.bf16.msra.mxu0 0
    %454 = vmatprep.subr.bf16.mxu0 0
    %455 = vmatpush1.bf16.msra.mxu0 0
    %456 = vmatprep.subr.bf16.mxu0 0
    %457 = vmatpush1.bf16.msra.mxu0 0
    %458 = vmatprep.subr.bf16.mxu0 0
    %459 = vmatpush1.bf16.msra.mxu0 0
    %460 = vmatprep.subr.bf16.mxu0 0
    %461 = vmatpush1.bf16.msra.mxu0 0
    %462 = vmatprep.subr.bf16.mxu0 0
    %463 = vmatpush1.bf16.msra.mxu0 0
    %464 = vmatprep.subr.bf16.mxu0 0
    %465 = vmatpush1.bf16.msra.mxu0 0
    %466 = vmatprep.subr.bf16.mxu0 0
    %467 = vmatpush1.bf16.msra.mxu0 0
    %468 = vmatprep.mubr.bf16.mxu0 0
    %469 = vmatmul.mubr.bf16.gmra.mrb[0].mxu0 %v99
    %v470 = vpop.f32.mrb[0].mxu0
    %v471 = vadd.f32 %v349, %v470
    %v472 = vpop.f32.mrb[0].mxu0
    %v473 = vadd.f32 %v353, %v472
    %v474 = vpop.f32.mrb[0].mxu0
    %v475 = vadd.f32 %v349, %v474
    %v476 = vpop.f32.mrb[0].mxu0
    %v477 = vadd.f32 %v353, %v476
    %478 = vmatprep.mubr.bf16.mxu0 0
    %479 = vmatmul.mubr.bf16.gmra.mrb[0].mxu0 %v100
    %v480 = vpop.f32.mrb[0].mxu0
    %v481 = vadd.f32 %v349, %v480
    %v482 = vpop.f32.mrb[0].mxu0
    %v483 = vadd.f32 %v353, %v482
    %v484 = vpop.f32.mrb[0].mxu0
    %v485 = vadd.f32 %v349, %v484
    %v486 = vpop.f32.mrb[0].mxu0
    %v487 = vadd.f32 %v353, %v486
    %488 = vmatprep.mubr.bf16.mxu0 0
    %489 = vmatmul.mubr.bf16.gmra.mrb[0].mxu0 %v101
    %v490 = vpop.f32.mrb[0].mxu0
    %v491 = vadd.f32 %v349, %v490
    %v492 = vpop.f32.mrb[0].mxu0
    %v493 = vadd.f32 %v353, %v492
    %v494 = vpop.f32.mrb[0].mxu0
    %v495 = vadd.f32 %v349, %v494
    %v496 = vpop.f32.mrb[0].mxu0
    %v497 = vadd.f32 %v353, %v496
    %498 = vmatprep.mubr.bf16.mxu0 0
    %499 = vmatmul.mubr.bf16.gmra.mrb[0].mxu0 %v102
    %v500 = vpop.f32.mrb[0].mxu0
    %v501 = vadd.f32 %v349, %v500
    %v502 = vpop.f32.mrb[0].mxu0
    %v503 = vadd.f32 %v353, %v502
    %v504 = vpop.f32.mrb[0].mxu0
    %v505 = vadd.f32 %v349, %v504
    %v506 = vpop.f32.mrb[0].mxu0
    %v507 = vadd.f32 %v353, %v506
    %508 = vmatprep.mubr.bf16.mxu0 0
    %509 = vmatmul.mubr.bf16.gmra.mrb[0].mxu0 %v103
    %v510 = vpop.f32.mrb[0].mxu0
    %v511 = vadd.f32 %v349, %v510
    %v512 = vpop.f32.mrb[0].mxu0
    %v513 = vadd.f32 %v353, %v512
    %v514 = vpop.f32.mrb[0].mxu0
    %v515 = vadd.f32 %v349, %v514
    %v516 = vpop.f32.mrb[0].mxu0
    %v517 = vadd.f32 %v353, %v516
    %518 = vmatprep.mubr.bf16.mxu0 0
    %519 = vmatmul.mubr.bf16.gmra.mrb[0].mxu0 %v104
    %v520 = vpop.f32.mrb[0].mxu0
    %v521 = vadd.f32 %v349, %v520
    %v522 = vpop.f32.mrb[0].mxu0
    %v523 = vadd.f32 %v353, %v522
    %v524 = vpop.f32.mrb[0].mxu0
    %v525 = vadd.f32 %v349, %v524
    %v526 = vpop.f32.mrb[0].mxu0
    %v527 = vadd.f32 %v353, %v526
    %528 = vmatprep.mubr.bf16.mxu0 0
    %529 = vmatmul.mubr.bf16.gmra.mrb[0].mxu0 %v105
    %v530 = vpop.f32.mrb[0].mxu0
    %v531 = vadd.f32 %v349, %v530
    %v532 = vpop.f32.mrb[0].mxu0
    %v533 = vadd.f32 %v353, %v532
    %v534 = vpop.f32.mrb[0].mxu0
    %v535 = vadd.f32 %v349, %v534
    %v536 = vpop.f32.mrb[0].mxu0
    %v537 = vadd.f32 %v353, %v536
    %538 = vmatprep.mubr.bf16.mxu0 0
    %539 = vmatmul.mubr.bf16.gmra.mrb[0].mxu0 %v106
    %v540 = vpop.f32.mrb[0].mxu0
    %v541 = vadd.f32 %v349, %v540
    %v542 = vpop.f32.mrb[0].mxu0
    %v543 = vadd.f32 %v353, %v542
    %v544 = vpop.f32.mrb[0].mxu0
    %v545 = vadd.f32 %v349, %v544
    %v546 = vpop.f32.mrb[0].mxu0
    %v547 = vadd.f32 %v353, %v546
    %548 = vdwg.mxu0
    %v549 = vmul.f32 %v471, 0.5
    %v550 = vmul.f32 %v473, 0.5
    %v551 = vmul.f32 %v475, 0.5
    %v552 = vmul.f32 %v477, 0.5
    %v553 = vmul.f32 %v481, 0.5
    %v554 = vmul.f32 %v483, 0.5
    %v555 = vmul.f32 %v485, 0.5
    %v556 = vmul.f32 %v487, 0.5
    %v557 = vmul.f32 %v491, 0.5
    %v558 = vmul.f32 %v493, 0.5
    %v559 = vmul.f32 %v495, 0.5
    %v560 = vmul.f32 %v497, 0.5
    %v561 = vmul.f32 %v501, 0.5
    %v562 = vmul.f32 %v503, 0.5
    %v563 = vmul.f32 %v505, 0.5
    %v564 = vmul.f32 %v507, 0.5
    %v565 = vmul.f32 %v511, 0.5
    %v566 = vmul.f32 %v513, 0.5
    %v567 = vmul.f32 %v515, 0.5
    %v568 = vmul.f32 %v517, 0.5
    %v569 = vmul.f32 %v521, 0.5
    %v570 = vmul.f32 %v523, 0.5
    %v571 = vmul.f32 %v525, 0.5
    %v572 = vmul.f32 %v527, 0.5
    %v573 = vmul.f32 %v531, 0.5
    %v574 = vmul.f32 %v533, 0.5
    %v575 = vmul.f32 %v535, 0.5
    %v576 = vmul.f32 %v537, 0.5
    %v577 = vmul.f32 %v541, 0.5
    %v578 = vmul.f32 %v543, 0.5
    %v579 = vmul.f32 %v545, 0.5
    %v580 = vmul.f32 %v547, 0.5
    %v581 = vmul.f32 %v471, 0.70710677
    %v582 = vmul.f32 %v473, 0.70710677
    %v583 = vmul.f32 %v475, 0.70710677
    %v584 = vmul.f32 %v477, 0.70710677
    %v585 = vmul.f32 %v481, 0.70710677
    %v586 = vmul.f32 %v483, 0.70710677
    %v587 = vmul.f32 %v485, 0.70710677
    %v588 = vmul.f32 %v487, 0.70710677
    %v589 = vmul.f32 %v491, 0.70710677
    %v590 = vmul.f32 %v493, 0.70710677
    %v591 = vmul.f32 %v495, 0.70710677
    %v592 = vmul.f32 %v497, 0.70710677
    %v593 = vmul.f32 %v501, 0.70710677
    %v594 = vmul.f32 %v503, 0.70710677
    %v595 = vmul.f32 %v505, 0.70710677
    %v596 = vmul.f32 %v507, 0.70710677
    %v597 = vmul.f32 %v511, 0.70710677
    %v598 = vmul.f32 %v513, 0.70710677
    %v599 = vmul.f32 %v515, 0.70710677
    %v600 = vmul.f32 %v517, 0.70710677
    %v601 = vmul.f32 %v521, 0.70710677
    %v602 = vmul.f32 %v523, 0.70710677
    %v603 = vmul.f32 %v525, 0.70710677
    %v604 = vmul.f32 %v527, 0.70710677
    %v605 = vmul.f32 %v531, 0.70710677
    %v606 = vmul.f32 %v533, 0.70710677
    %v607 = vmul.f32 %v535, 0.70710677
    %v608 = vmul.f32 %v537, 0.70710677
    %v609 = vmul.f32 %v541, 0.70710677
    %v610 = vmul.f32 %v543, 0.70710677
    %v611 = vmul.f32 %v545, 0.70710677
    %v612 = vmul.f32 %v547, 0.70710677
    %v613 = verf.f32.pop %v581
    %v614 = verf.f32.pop %v582
    %v615 = verf.f32.pop %v583
    %v616 = verf.f32.pop %v584
    %v617 = verf.f32.pop %v585
    %v618 = verf.f32.pop %v586
    %v619 = verf.f32.pop %v587
    %v620 = verf.f32.pop %v588
    %v621 = verf.f32.pop %v589
    %v622 = verf.f32.pop %v590
    %v623 = verf.f32.pop %v591
    %v624 = verf.f32.pop %v592
    %v625 = verf.f32.pop %v593
    %v626 = verf.f32.pop %v594
    %v627 = verf.f32.pop %v595
    %v628 = verf.f32.pop %v596
    %v629 = verf.f32.pop %v597
    %v630 = verf.f32.pop %v598
    %v631 = verf.f32.pop %v599
    %v632 = verf.f32.pop %v600
    %v633 = verf.f32.pop %v601
    %v634 = verf.f32.pop %v602
    %v635 = verf.f32.pop %v603
    %v636 = verf.f32.pop %v604
    %v637 = verf.f32.pop %v605
    %v638 = verf.f32.pop %v606
    %v639 = verf.f32.pop %v607
    %v640 = verf.f32.pop %v608
    %v641 = verf.f32.pop %v609
    %v642 = verf.f32.pop %v610
    %v643 = verf.f32.pop %v611
    %v644 = verf.f32.pop %v612
    %v645 = vadd.f32 %v613, 1.0
    %v646 = vadd.f32 %v614, 1.0
    %v647 = vadd.f32 %v615, 1.0
    %v648 = vadd.f32 %v616, 1.0
    %v649 = vadd.f32 %v617, 1.0
    %v650 = vadd.f32 %v618, 1.0
    %v651 = vadd.f32 %v619, 1.0
    %v652 = vadd.f32 %v620, 1.0
    %v653 = vadd.f32 %v621, 1.0
    %v654 = vadd.f32 %v622, 1.0
    %v655 = vadd.f32 %v623, 1.0
    %v656 = vadd.f32 %v624, 1.0
    %v657 = vadd.f32 %v625, 1.0
    %v658 = vadd.f32 %v626, 1.0
    %v659 = vadd.f32 %v627, 1.0
    %v660 = vadd.f32 %v628, 1.0
    %v661 = vadd.f32 %v629, 1.0
    %v662 = vadd.f32 %v630, 1.0
    %v663 = vadd.f32 %v631, 1.0
    %v664 = vadd.f32 %v632, 1.0
    %v665 = vadd.f32 %v633, 1.0
    %v666 = vadd.f32 %v634, 1.0
    %v667 = vadd.f32 %v635, 1.0
    %v668 = vadd.f32 %v636, 1.0
    %v669 = vadd.f32 %v637, 1.0
    %v670 = vadd.f32 %v638, 1.0
    %v671 = vadd.f32 %v639, 1.0
    %v672 = vadd.f32 %v640, 1.0
    %v673 = vadd.f32 %v641, 1.0
    %v674 = vadd.f32 %v642, 1.0
    %v675 = vadd.f32 %v643, 1.0
    %v676 = vadd.f32 %v644, 1.0
    %v677 = vmul.f32 %v549, %v645
    %v678 = vmul.f32 %v550, %v646
    %v679 = vmul.f32 %v551, %v647
    %v680 = vmul.f32 %v552, %v648
    %v681 = vmul.f32 %v553, %v649
    %v682 = vmul.f32 %v554, %v650
    %v683 = vmul.f32 %v555, %v651
    %v684 = vmul.f32 %v556, %v652
    %v685 = vmul.f32 %v557, %v653
    %v686 = vmul.f32 %v558, %v654
    %v687 = vmul.f32 %v559, %v655
    %v688 = vmul.f32 %v560, %v656
    %v689 = vmul.f32 %v561, %v657
    %v690 = vmul.f32 %v562, %v658
    %v691 = vmul.f32 %v563, %v659
    %v692 = vmul.f32 %v564, %v660
    %v693 = vmul.f32 %v565, %v661
    %v694 = vmul.f32 %v566, %v662
    %v695 = vmul.f32 %v567, %v663
    %v696 = vmul.f32 %v568, %v664
    %v697 = vmul.f32 %v569, %v665
    %v698 = vmul.f32 %v570, %v666
    %v699 = vmul.f32 %v571, %v667
    %v700 = vmul.f32 %v572, %v668
    %v701 = vmul.f32 %v573, %v669
    %v702 = vmul.f32 %v574, %v670
    %v703 = vmul.f32 %v575, %v671
    %v704 = vmul.f32 %v576, %v672
    %v705 = vmul.f32 %v577, %v673
    %v706 = vmul.f32 %v578, %v674
    %v707 = vmul.f32 %v579, %v675
    %v708 = vmul.f32 %v580, %v676
    %v709 = vmul.f32 %v250, %v677
    %v710 = vmul.f32 %v252, %v678
    %v711 = vmul.f32 %v254, %v679
    %v712 = vmul.f32 %v256, %v680
    %v713 = vmul.f32 %v260, %v681
    %v714 = vmul.f32 %v262, %v682
    %v715 = vmul.f32 %v264, %v683
    %v716 = vmul.f32 %v266, %v684
    %v717 = vmul.f32 %v270, %v685
    %v718 = vmul.f32 %v272, %v686
    %v719 = vmul.f32 %v274, %v687
    %v720 = vmul.f32 %v276, %v688
    %v721 = vmul.f32 %v280, %v689
    %v722 = vmul.f32 %v282, %v690
    %v723 = vmul.f32 %v284, %v691
    %v724 = vmul.f32 %v286, %v692
    %v725 = vmul.f32 %v290, %v693
    %v726 = vmul.f32 %v292, %v694
    %v727 = vmul.f32 %v294, %v695
    %v728 = vmul.f32 %v296, %v696
    %v729 = vmul.f32 %v300, %v697
    %v730 = vmul.f32 %v302, %v698
    %v731 = vmul.f32 %v304, %v699
    %v732 = vmul.f32 %v306, %v700
    %v733 = vmul.f32 %v310, %v701
    %v734 = vmul.f32 %v312, %v702
    %v735 = vmul.f32 %v314, %v703
    %v736 = vmul.f32 %v316, %v704
    %v737 = vmul.f32 %v320, %v705
    %v738 = vmul.f32 %v322, %v706
    %v739 = vmul.f32 %v324, %v707
    %v740 = vmul.f32 %v326, %v708
    %v741 = vpack.c.bf16 %v711, %v709
    %v742 = vpack.c.bf16 %v712, %v710
    %v743 = vpack.c.bf16 %v715, %v713
    %v744 = vpack.c.bf16 %v716, %v714
    %v745 = vpack.c.bf16 %v719, %v717
    %v746 = vpack.c.bf16 %v720, %v718
    %v747 = vpack.c.bf16 %v723, %v721
    %v748 = vpack.c.bf16 %v724, %v722
    %v749 = vpack.c.bf16 %v727, %v725
    %v750 = vpack.c.bf16 %v728, %v726
    %v751 = vpack.c.bf16 %v731, %v729
    %v752 = vpack.c.bf16 %v732, %v730
    %v753 = vpack.c.bf16 %v735, %v733
    %v754 = vpack.c.bf16 %v736, %v734
    %v755 = vpack.c.bf16 %v739, %v737
    %v756 = vpack.c.bf16 %v740, %v738
    %v757 = vld [vmem:[#allocation8] sm:$0xf]
    %v758 = vld [vmem:[#allocation8 + $0x4] sm:$0xf]
    %v759 = vld [vmem:[#allocation8 + $0x8] sm:$0xf]
    %v760 = vld [vmem:[#allocation8 + $0xc] sm:$0xf]
    %v761 = vld [vmem:[#allocation8 + $0x10] sm:$0xf]
    %v762 = vld [vmem:[#allocation8 + $0x14] sm:$0xf]
    %v763 = vld [vmem:[#allocation8 + $0x18] sm:$0xf]
    %v764 = vld [vmem:[#allocation8 + $0x1c] sm:$0xf]
    %v765 = vld [vmem:[#allocation8 + $0x20] sm:$0xf]
    %v766 = vld [vmem:[#allocation8 + $0x24] sm:$0xf]
    %v767 = vld [vmem:[#allocation8 + $0x28] sm:$0xf]
    %v768 = vld [vmem:[#allocation8 + $0x2c] sm:$0xf]
    %v769 = vld [vmem:[#allocation8 + $0x30] sm:$0xf]
    %v770 = vld [vmem:[#allocation8 + $0x34] sm:$0xf]
    %v771 = vld [vmem:[#allocation8 + $0x38] sm:$0xf]
    %v772 = vld [vmem:[#allocation8 + $0x3c] sm:$0xf]
    %v773 = vld [vmem:[#allocation8 + $0x40] sm:$0xf]
    %v774 = vld [vmem:[#allocation8 + $0x44] sm:$0xf]
    %v775 = vld [vmem:[#allocation8 + $0x48] sm:$0xf]
    %v776 = vld [vmem:[#allocation8 + $0x4c] sm:$0xf]
    %v777 = vld [vmem:[#allocation8 + $0x50] sm:$0xf]
    %v778 = vld [vmem:[#allocation8 + $0x54] sm:$0xf]
    %v779 = vld [vmem:[#allocation8 + $0x58] sm:$0xf]
    %v780 = vld [vmem:[#allocation8 + $0x5c] sm:$0xf]
    %v781 = vld [vmem:[#allocation8 + $0x60] sm:$0xf]
    %v782 = vld [vmem:[#allocation8 + $0x64] sm:$0xf]
    %v783 = vld [vmem:[#allocation8 + $0x68] sm:$0xf]
    %v784 = vld [vmem:[#allocation8 + $0x6c] sm:$0xf]
    %v785 = vld [vmem:[#allocation8 + $0x70] sm:$0xf]
    %v786 = vld [vmem:[#allocation8 + $0x74] sm:$0xf]
    %v787 = vld [vmem:[#allocation8 + $0x78] sm:$0xf]
    %v788 = vld [vmem:[#allocation8 + $0x7c] sm:$0xf]
    %v789 = vld [vmem:[%s6] sm:$0x1]
    %v791 = vlaneseq
    %v792 = vshrl.u32 %v791, 7
    %v793 = vsub.s32 0, %v792
    %v794 = vrot.slane %v789, %v793
    %v828 = vunpack.c.l.b16 %v757
    %v829 = vunpack.c.l.b16 %v758
    %v830 = vunpack.c.l.b16 %v759
    %v831 = vunpack.c.l.b16 %v760
    %v832 = vunpack.c.l.b16 %v761
    %v833 = vunpack.c.l.b16 %v762
    %v834 = vunpack.c.l.b16 %v763
    %v835 = vunpack.c.l.b16 %v764
    %v836 = vunpack.c.l.b16 %v765
    %v837 = vunpack.c.l.b16 %v766
    %v838 = vunpack.c.l.b16 %v767
    %v839 = vunpack.c.l.b16 %v768
    %v840 = vunpack.c.l.b16 %v769
    %v841 = vunpack.c.l.b16 %v770
    %v842 = vunpack.c.l.b16 %v771
    %v843 = vunpack.c.l.b16 %v772
    %v844 = vunpack.c.l.b16 %v773
    %v845 = vunpack.c.l.b16 %v774
    %v846 = vunpack.c.l.b16 %v775
    %v847 = vunpack.c.l.b16 %v776
    %v848 = vunpack.c.l.b16 %v777
    %v849 = vunpack.c.l.b16 %v778
    %v850 = vunpack.c.l.b16 %v779
    %v851 = vunpack.c.l.b16 %v780
    %v852 = vunpack.c.l.b16 %v781
    %v853 = vunpack.c.l.b16 %v782
    %v854 = vunpack.c.l.b16 %v783
    %v855 = vunpack.c.l.b16 %v784
    %v856 = vunpack.c.l.b16 %v785
    %v857 = vunpack.c.l.b16 %v786
    %v858 = vunpack.c.l.b16 %v787
    %v859 = vunpack.c.l.b16 %v788
    %v860 = vpack.c.b16 %v829, %v828
    %v861 = vpack.c.b16 %v831, %v830
    %v862 = vpack.c.b16 %v833, %v832
    %v863 = vpack.c.b16 %v835, %v834
    %v864 = vpack.c.b16 %v837, %v836
    %v865 = vpack.c.b16 %v839, %v838
    %v866 = vpack.c.b16 %v841, %v840
    %v867 = vpack.c.b16 %v843, %v842
    %v868 = vpack.c.b16 %v845, %v844
    %v869 = vpack.c.b16 %v847, %v846
    %v870 = vpack.c.b16 %v849, %v848
    %v871 = vpack.c.b16 %v851, %v850
    %v872 = vpack.c.b16 %v853, %v852
    %v873 = vpack.c.b16 %v855, %v854
    %v874 = vpack.c.b16 %v857, %v856
    %v875 = vpack.c.b16 %v859, %v858
    %892 = vmatprep.subr.bf16.mxu0 0
    %893 = vmatpush1.bf16.msra.mxu0 %v860
    %894 = vmatprep.subr.bf16.mxu0 0
    %895 = vmatpush1.bf16.msra.mxu0 %v861
    %896 = vmatprep.subr.bf16.mxu0 0
    %897 = vmatpush1.bf16.msra.mxu0 %v862
    %898 = vmatprep.subr.bf16.mxu0 0
    %899 = vmatpush1.bf16.msra.mxu0 %v863
    %900 = vmatprep.subr.bf16.mxu0 0
    %901 = vmatpush1.bf16.msra.mxu0 %v864
    %902 = vmatprep.subr.bf16.mxu0 0
    %903 = vmatpush1.bf16.msra.mxu0 %v865
    %904 = vmatprep.subr.bf16.mxu0 0
    %905 = vmatpush1.bf16.msra.mxu0 %v866
    %906 = vmatprep.subr.bf16.mxu0 0
    %907 = vmatpush1.bf16.msra.mxu0 %v867
    %908 = vmatprep.subr.bf16.mxu0 0
    %909 = vmatpush1.bf16.msra.mxu0 %v868
    %910 = vmatprep.subr.bf16.mxu0 0
    %911 = vmatpush1.bf16.msra.mxu0 %v869
    %912 = vmatprep.subr.bf16.mxu0 0
    %913 = vmatpush1.bf16.msra.mxu0 %v870
    %914 = vmatprep.subr.bf16.mxu0 0
    %915 = vmatpush1.bf16.msra.mxu0 %v871
    %916 = vmatprep.subr.bf16.mxu0 0
    %917 = vmatpush1.bf16.msra.mxu0 %v872
    %918 = vmatprep.subr.bf16.mxu0 0
    %919 = vmatpush1.bf16.msra.mxu0 %v873
    %920 = vmatprep.subr.bf16.mxu0 0
    %921 = vmatpush1.bf16.msra.mxu0 %v874
    %922 = vmatprep.subr.bf16.mxu0 0
    %923 = vmatpush1.bf16.msra.mxu0 %v875
    %924 = vmatprep.mubr.bf16.mxu0 %v742
    %925 = vmatmul.mubr.bf16.gmra.mrb[0].mxu0 %v741
    %v926 = vpop.f32.mrb[0].mxu0
    %v927 = vadd.f32 %v794, %v926
    %v928 = vpop.f32.mrb[0].mxu0
    %v929 = vpop.f32.mrb[0].mxu0
    %v930 = vadd.f32 %v794, %v929
    %v931 = vpop.f32.mrb[0].mxu0
    %932 = vmatprep.mubr.bf16.mxu0 %v744
    %933 = vmatmul.mubr.bf16.gmra.mrb[0].mxu0 %v743
    %v934 = vpop.f32.mrb[0].mxu0
    %v935 = vadd.f32 %v794, %v934
    %v936 = vpop.f32.mrb[0].mxu0
    %v937 = vpop.f32.mrb[0].mxu0
    %v938 = vadd.f32 %v794, %v937
    %v939 = vpop.f32.mrb[0].mxu0
    %940 = vmatprep.mubr.bf16.mxu0 %v746
    %941 = vmatmul.mubr.bf16.gmra.mrb[0].mxu0 %v745
    %v942 = vpop.f32.mrb[0].mxu0
    %v943 = vadd.f32 %v794, %v942
    %v944 = vpop.f32.mrb[0].mxu0
    %v945 = vpop.f32.mrb[0].mxu0
    %v946 = vadd.f32 %v794, %v945
    %v947 = vpop.f32.mrb[0].mxu0
    %948 = vmatprep.mubr.bf16.mxu0 %v748
    %949 = vmatmul.mubr.bf16.gmra.mrb[0].mxu0 %v747
    %v950 = vpop.f32.mrb[0].mxu0
    %v951 = vadd.f32 %v794, %v950
    %v952 = vpop.f32.mrb[0].mxu0
    %v953 = vpop.f32.mrb[0].mxu0
    %v954 = vadd.f32 %v794, %v953
    %v955 = vpop.f32.mrb[0].mxu0
    %956 = vmatprep.mubr.bf16.mxu0 %v750
    %957 = vmatmul.mubr.bf16.gmra.mrb[0].mxu0 %v749
    %v958 = vpop.f32.mrb[0].mxu0
    %v959 = vadd.f32 %v794, %v958
    %v960 = vpop.f32.mrb[0].mxu0
    %v961 = vpop.f32.mrb[0].mxu0
    %v962 = vadd.f32 %v794, %v961
    %v963 = vpop.f32.mrb[0].mxu0
    %964 = vmatprep.mubr.bf16.mxu0 %v752
    %965 = vmatmul.mubr.bf16.gmra.mrb[0].mxu0 %v751
    %v966 = vpop.f32.mrb[0].mxu0
    %v967 = vadd.f32 %v794, %v966
    %v968 = vpop.f32.mrb[0].mxu0
    %v969 = vpop.f32.mrb[0].mxu0
    %v970 = vadd.f32 %v794, %v969
    %v971 = vpop.f32.mrb[0].mxu0
    %972 = vmatprep.mubr.bf16.mxu0 %v754
    %973 = vmatmul.mubr.bf16.gmra.mrb[0].mxu0 %v753
    %v974 = vpop.f32.mrb[0].mxu0
    %v975 = vadd.f32 %v794, %v974
    %v976 = vpop.f32.mrb[0].mxu0
    %v977 = vpop.f32.mrb[0].mxu0
    %v978 = vadd.f32 %v794, %v977
    %v979 = vpop.f32.mrb[0].mxu0
    %980 = vmatprep.mubr.bf16.mxu0 %v756
    %981 = vmatmul.mubr.bf16.gmra.mrb[0].mxu0 %v755
    %v982 = vpop.f32.mrb[0].mxu0
    %v983 = vadd.f32 %v794, %v982
    %v984 = vpop.f32.mrb[0].mxu0
    %v985 = vpop.f32.mrb[0].mxu0
    %v986 = vadd.f32 %v794, %v985
    %v987 = vpop.f32.mrb[0].mxu0
    %988 = vdwg.mxu0
    %989 = vst [vmem:[#allocation10] sm:$0xff] %v927
    %990 = vst [vmem:[#allocation10 + $0x8] sm:$0xff] %v930
    %991 = vst [vmem:[#allocation10 + $0x10] sm:$0xff] %v935
    %992 = vst [vmem:[#allocation10 + $0x18] sm:$0xff] %v938
    %993 = vst [vmem:[#allocation10 + $0x20] sm:$0xff] %v943
    %994 = vst [vmem:[#allocation10 + $0x28] sm:$0xff] %v946
    %995 = vst [vmem:[#allocation10 + $0x30] sm:$0xff] %v951
    %996 = vst [vmem:[#allocation10 + $0x38] sm:$0xff] %v954
    %997 = vst [vmem:[#allocation10 + $0x40] sm:$0xff] %v959
    %998 = vst [vmem:[#allocation10 + $0x48] sm:$0xff] %v962
    %999 = vst [vmem:[#allocation10 + $0x50] sm:$0xff] %v967
    %1000 = vst [vmem:[#allocation10 + $0x58] sm:$0xff] %v970
    %1001 = vst [vmem:[#allocation10 + $0x60] sm:$0xff] %v975
    %1002 = vst [vmem:[#allocation10 + $0x68] sm:$0xff] %v978
    %1003 = vst [vmem:[#allocation10 + $0x70] sm:$0xff] %v983
    %1004 = vst [vmem:[#allocation10 + $0x78] sm:$0xff] %v986
    // Predicated region
    $region46: #{tpu_custom_call.1} parent=1 // pred_check
      _
    $region47: #{tpu_custom_call.1} parent=1 // pred_check_branch
      %1006 = sbr.rel (0) target = $region49
    $region48: #{tpu_custom_call.1} parent=1 // pred_region
      %s1008 = ssub.s32 2048, 2048
      %1009 = vsyncadd [#allocation4], %s1008
      %s1010 = sshll.u32 [#allocation10], 4
      %s1011 = int_to_ptr.vmem [resolvable:$true] %s1010
      %1016 = dma.vmem_to_hbm [thread:$0]  %s1011, 2048, %s7, [#allocation4], 128, 128, 8
    $region49: #{tpu_custom_call.1} parent=1 // pred_fallthru
      _
    // Predicated region
    $region50: #{tpu_custom_call.1} parent=1 // pred_check
      _
    $region51: #{tpu_custom_call.1} parent=1 // pred_check_branch
      %1018 = sbr.rel (0) target = $region53
    $region52: #{tpu_custom_call.1} parent=1 // pred_region
      %1019 = dma.done [#allocation4], 2048
    $region53: #{tpu_custom_call.1} parent=1 // pred_fallthru
      _
    %1020 = vsyncpa [#allocation3], 1
    %1021 = vsyncpa [#allocation6], 1
    %1022 = vsyncpa [#allocation9], 1
    %1023 = vsyncpa [#allocation4], 1

</llo_original>
